<compile_context>
chip_gen: v6e
topology: v6e:2x2x1
jax: 0.10.0
libtpu: 0.0.40
codegen_flags: <defaults>
</compile_context>

<pallas_src>
import math

import jax
import jax.numpy as jnp
from jax.experimental import pallas as pl
from jax.experimental.pallas import tpu as pltpu


def _round_up(x, m):
    return ((x + m - 1) // m) * m


def _vocab_tiling(V):
    """Vocab tile width (lane-dense) and padded vocab size."""
    tile_v = min(512, _round_up(V, 128))
    v_pad = _round_up(V, tile_v)
    return tile_v, v_pad


def _decoder_kernel(x_ref, h_ref, wih_ref, whh_ref, bih_ref, bhh_ref,
                    enc_ref, enct_ref, wc_h_ref, wc_c_ref, bc_ref,
                    wout_ref, bout_ref,
                    logits_ref, hid_ref, cc_ref):
    Hp = h_ref.shape[1]

    # ---- GRU + dot-attention + concat: run once (vocab tile 0), keep cc in VMEM ----
    @pl.when(pl.program_id(0) == 0)
    def _preamble():
        x = x_ref[...]                                    # (B, Hp) embedded token
        h = h_ref[...]                                    # (B, Hp) previous hidden

        # GRU cell, gate-fused matmuls; gate blocks are 128-lane aligned (r|z|n).
        gx = jnp.dot(x, wih_ref[...], preferred_element_type=jnp.float32) + bih_ref[...]
        gh = jnp.dot(h, whh_ref[...], preferred_element_type=jnp.float32) + bhh_ref[...]
        r = jax.nn.sigmoid(gx[:, :Hp] + gh[:, :Hp])
        z = jax.nn.sigmoid(gx[:, Hp:2 * Hp] + gh[:, Hp:2 * Hp])
        n = jnp.tanh(gx[:, 2 * Hp:] + r * gh[:, 2 * Hp:])
        h_new = (1.0 - z) * n + z * h                     # (B, Hp) == rnn_output
        hid_ref[...] = h_new.astype(hid_ref.dtype)

        # dot attention: scores use enc^T (B, Hp, L) so the contraction lands on
        # the RHS sublane dim (MXU-native, no in-kernel transpose of enc).
        scores = jnp.einsum("bqh,bhl->bql", h_new[:, None, :], enct_ref[...],
                            preferred_element_type=jnp.float32)       # (B, 1, L)
        scores = scores - jnp.max(scores, axis=-1, keepdims=True)
        e = jnp.exp(scores)
        attn = e * pl.reciprocal(jnp.sum(e, axis=-1, keepdims=True), approx=True)

        # context = attn.bmm(enc); contraction over L (sublane dim) is MXU-native.
        context = jnp.einsum("bql,blh->bqh", attn, enc_ref[...],
                             preferred_element_type=jnp.float32)[:, 0, :]  # (B, Hp)

        # concat linear split into two aligned (Hp, Hp) matmuls (no concatenate).
        cc_ref[...] = jnp.tanh(
            jnp.dot(h_new, wc_h_ref[...], preferred_element_type=jnp.float32)
            + jnp.dot(context, wc_c_ref[...], preferred_element_type=jnp.float32)
            + bc_ref[...])

    # ---- output projection, one vocab tile per grid step (bf16 weights, f32 acc) ----
    cc = cc_ref[...].astype(wout_ref.dtype)
    logits_ref[...] = (jnp.dot(cc, wout_ref[...], preferred_element_type=jnp.float32)
                       + bout_ref[...])


def init_params(key, hidden_size, output_size):
    H, V = hidden_size, output_size
    ks = jax.random.split(key, 9)
    s = 1.0 / jnp.sqrt(H)

    def u(k, shape, scale):
        return jax.random.uniform(k, shape, jnp.float32, -scale, scale)

    return {
        "embedding": u(ks[0], (V, H), 1.0),          # nn.Embedding(V, H)
        "gru_w_ih": u(ks[1], (3 * H, H), s),         # gate order [r, z, n]
        "gru_w_hh": u(ks[2], (3 * H, H), s),
        "gru_b_ih": u(ks[3], (3 * H,), s),
        "gru_b_hh": u(ks[4], (3 * H,), s),
        "concat_w": u(ks[5], (H, 2 * H), 1.0 / jnp.sqrt(2 * H)),
        "concat_b": u(ks[6], (H,), 1.0 / jnp.sqrt(2 * H)),
        "out_w": u(ks[7], (V, H), s),
        "out_b": u(ks[8], (V,), s),
    }


def pack_params(params, out_proj_dtype=jnp.bfloat16):
    """One-time weight re-layout (not per step):
       * H padded to Hp = multiple of 128; GRU gate blocks laid out 128-aligned.
       * concat weight split into (Hp, Hp) halves for [h_new | context].
       * output projection transposed, vocab-padded and stored in bf16 (the
         HBM-dominant weight); everything else stays f32 for recurrent precision.
    """
    H = params["gru_w_ih"].shape[1]
    V = params["out_w"].shape[0]
    Hp = _round_up(H, 128)
    tile_v, v_pad = _vocab_tiling(V)

    def pad_gate_w(w):                                    # (3H, H) -> (Hp, 3Hp)
        wt = w.T                                          # (H, 3H), cols [r|z|n]
        out = jnp.zeros((Hp, 3 * Hp), jnp.float32)
        for g in range(3):
            out = out.at[:H, g * Hp:g * Hp + H].set(wt[:, g * H:(g + 1) * H])
        return out

    def pad_gate_b(b):                                    # (3H,) -> (1, 3Hp)
        out = jnp.zeros((1, 3 * Hp), jnp.float32)
        for g in range(3):
            out = out.at[0, g * Hp:g * Hp + H].set(b[g * H:(g + 1) * H])
        return out

    wc = params["concat_w"]                               # (H, 2H); input [h_new; ctx]
    return {
        "embedding": jnp.zeros((V, Hp), jnp.float32).at[:, :H].set(params["embedding"]),
        "wih": pad_gate_w(params["gru_w_ih"]),            # (Hp, 3Hp)
        "whh": pad_gate_w(params["gru_w_hh"]),            # (Hp, 3Hp)
        "bih": pad_gate_b(params["gru_b_ih"]),            # (1, 3Hp)
        "bhh": pad_gate_b(params["gru_b_hh"]),            # (1, 3Hp)
        "wc_h": jnp.zeros((Hp, Hp), jnp.float32).at[:H, :H].set(wc[:, :H].T),
        "wc_c": jnp.zeros((Hp, Hp), jnp.float32).at[:H, :H].set(wc[:, H:].T),
        "bc": jnp.zeros((1, Hp), jnp.float32).at[0, :H].set(params["concat_b"]),
        "wout": (jnp.zeros((Hp, v_pad), jnp.float32)
                 .at[:H, :V].set(params["out_w"].T).astype(out_proj_dtype)),
        "bout": jnp.zeros((1, v_pad), jnp.float32).at[0, :V].set(params["out_b"]),
    }


def _nbytes(shape, dtype):
    return math.prod(shape) * jnp.dtype(dtype).itemsize


def luong_decoder_forward(packed, input_step, last_hidden, encoder_outputs):
    """input_step: (1, B) int32; last_hidden: (1, B, H); encoder_outputs: (L, B, H).
    Returns (output (B, V) softmax probs, hidden (1, B, H)) — matches the module."""
    V, Hp = packed["embedding"].shape
    H = last_hidden.shape[2]
    L = encoder_outputs.shape[0]
    B = input_step.shape[1]
    B_pad = _round_up(B, 8)                               # native sublane tile
    tile_v, v_pad = _vocab_tiling(V)
    nv = v_pad // tile_v

    # glue: embedding lookup (dropout is identity in eval mode)
    x = packed["embedding"][input_step[0]]                # (B, Hp)
    pb, ph = B_pad - B, Hp - H
    x = jnp.pad(x, ((0, pb), (0, 0)))
    h0 = jnp.pad(last_hidden[0], ((0, pb), (0, ph)))      # (B_pad, Hp)
    enc = jnp.pad(jnp.transpose(encoder_outputs, (1, 0, 2)),
                  ((0, pb), (0, 0), (0, ph)))             # (B_pad, L, Hp)
    encT = jnp.transpose(enc, (0, 2, 1))                  # (B_pad, Hp, L)

    const2 = lambda j: (0, 0)
    const3 = lambda j: (0, 0, 0)
    in_specs = [
        pl.BlockSpec((B_pad, Hp), const2),                # x
        pl.BlockSpec((B_pad, Hp), const2),                # h0
        pl.BlockSpec((Hp, 3 * Hp), const2),               # wih
        pl.BlockSpec((Hp, 3 * Hp), const2),               # whh
        pl.BlockSpec((1, 3 * Hp), const2),                # bih
        pl.BlockSpec((1, 3 * Hp), const2),                # bhh
        pl.BlockSpec((B_pad, L, Hp), const3),             # enc
        pl.BlockSpec((B_pad, Hp, L), const3),             # enc^T
        pl.BlockSpec((Hp, Hp), const2),                   # wc_h
        pl.BlockSpec((Hp, Hp), const2),                   # wc_c
        pl.BlockSpec((1, Hp), const2),                    # bc
        pl.BlockSpec((Hp, tile_v), lambda j: (0, j)),     # wout tile (bf16)
        pl.BlockSpec((1, tile_v), lambda j: (0, j)),      # bout tile
    ]
    out_specs = [
        pl.BlockSpec((B_pad, tile_v), lambda j: (0, j)),  # logits
        pl.BlockSpec((B_pad, Hp), const2),                # hidden (written at j==0)
    ]

    # VMEM budget sized to the actual blocks (x2 for double buffering + margin).
    block_bytes = (
        2 * _nbytes((B_pad, Hp), jnp.float32)             # x, h0
        + 2 * _nbytes((Hp, 3 * Hp), jnp.float32)          # wih, whh
        + 2 * _nbytes((8, 3 * Hp), jnp.float32)           # bih, bhh (sublane-padded)
        + 2 * _nbytes((B_pad, L, Hp), jnp.float32)        # enc, enc^T
        + 2 * _nbytes((Hp, Hp), jnp.float32)              # wc_h, wc_c
        + _nbytes((8, Hp), jnp.float32)                   # bc
        + _nbytes((Hp, tile_v), packed["wout"].dtype)     # wout tile
        + _nbytes((8, tile_v), jnp.float32)               # bout tile
        + _nbytes((B_pad, tile_v), jnp.float32)           # logits tile
        + 2 * _nbytes((B_pad, Hp), jnp.float32))          # hidden out + cc scratch
    vmem_limit = min(2 * block_bytes + (4 << 20), 100 << 20)

    logits, h_p = pl.pallas_call(
        _decoder_kernel,
        out_shape=(jax.ShapeDtypeStruct((B_pad, v_pad), jnp.float32),
                   jax.ShapeDtypeStruct((B_pad, Hp), jnp.float32)),
        grid_spec=pltpu.PrefetchScalarGridSpec(
            num_scalar_prefetch=0,
            grid=(nv,),
            in_specs=in_specs,
            out_specs=out_specs,
            scratch_shapes=[pltpu.VMEM((B_pad, Hp), jnp.float32)],   # cc carry
        ),
        # alias previous-hidden input -> new-hidden output (no extra HBM buffer
        # / writeback when this step is driven in a decode loop).
        input_output_aliases={1: 1},
        compiler_params=pltpu.CompilerParams(
            dimension_semantics=("arbitrary",),
            vmem_limit_bytes=int(vmem_limit)),
    )(x, h0, packed["wih"], packed["whh"], packed["bih"], packed["bhh"],
      enc, encT, packed["wc_h"], packed["wc_c"], packed["bc"],
      packed["wout"], packed["bout"])

    # exact final softmax over the real vocab (padded columns / rows sliced off)
    out = jax.nn.softmax(logits[:B, :V], axis=1)
    return out, h_p[None, :B, :H]                         # (B, V), (1, B, H)


def _reference_forward(params, input_step, last_hidden, encoder_outputs):
    """Pure-JAX f32 reference matching the PyTorch forward ('dot' attention)."""
    H = params["gru_w_ih"].shape[1]
    x = params["embedding"][input_step[0]]                # (B, H)
    h = last_hidden[0]
    gx = x @ params["gru_w_ih"].T + params["gru_b_ih"]
    gh = h @ params["gru_w_hh"].T + params["gru_b_hh"]
    r = jax.nn.sigmoid(gx[:, :H] + gh[:, :H])
    z = jax.nn.sigmoid(gx[:, H:2 * H] + gh[:, H:2 * H])
    n = jnp.tanh(gx[:, 2 * H:] + r * gh[:, 2 * H:])
    h_new = (1 - z) * n + z * h                           # rnn_output (B, H)
    scores = jnp.sum(h_new[None, :, :] * encoder_outputs, axis=2).T  # (B, L)
    attn = jax.nn.softmax(scores, axis=1)
    context = jnp.einsum("bl,lbh->bh", attn, encoder_outputs)
    cc = jnp.tanh(jnp.concatenate([h_new, context], 1) @ params["concat_w"].T
                  + params["concat_b"])
    out = jax.nn.softmax(cc @ params["out_w"].T + params["out_b"], axis=1)
    return out, h_new[None]


if __name__ == "__main__":
    B, H, L, V = 2, 32, 8, 64   # batch, hidden, encoder seq len, vocab/output size

    key = jax.random.PRNGKey(0)
    kp, k1, k2, k3 = jax.random.split(key, 4)
    params = init_params(kp, H, V)
    packed = pack_params(params)       # one-time weight re-layout (not per step)

    input_step = jax.random.randint(k1, (1, B), 0, V, dtype=jnp.int32)
    last_hidden = jax.random.normal(k2, (1, B, H), jnp.float32)
    encoder_outputs = jax.random.normal(k3, (L, B, H), jnp.float32)

    fwd = jax.jit(luong_decoder_forward)
    out, hidden = fwd(packed, input_step, last_hidden, encoder_outputs)
    jax.block_until_ready((out, hidden))

    ref_out, ref_hidden = _reference_forward(params, input_step, last_hidden,
                                             encoder_outputs)
    assert out.shape == (B, V) and hidden.shape == (1, B, H)
    # GRU / attention / concat path is full f32 -> tight tolerance on the hidden.
    assert jnp.allclose(hidden, ref_hidden, atol=1e-5, rtol=1e-5)
    # output probs: only error source is the bf16 output-projection weights.
    assert jnp.allclose(out, ref_out, atol=2e-3, rtol=2e-3)
    print("KERNEL_OK")
</pallas_src>

<mosaic_0001>
module attributes {stable_mosaic.version = 11 : i64} {
  func.func @_decoder_kernel(%arg0: i32, %arg1: memref<8x128xf32, #tpu.memory_space<vmem>>, %arg2: memref<8x128xf32, #tpu.memory_space<vmem>>, %arg3: memref<128x384xf32, #tpu.memory_space<vmem>>, %arg4: memref<128x384xf32, #tpu.memory_space<vmem>>, %arg5: memref<1x384xf32, #tpu.memory_space<vmem>>, %arg6: memref<1x384xf32, #tpu.memory_space<vmem>>, %arg7: memref<8x8x128xf32, #tpu.memory_space<vmem>>, %arg8: memref<8x128x8xf32, #tpu.memory_space<vmem>>, %arg9: memref<128x128xf32, #tpu.memory_space<vmem>>, %arg10: memref<128x128xf32, #tpu.memory_space<vmem>>, %arg11: memref<1x128xf32, #tpu.memory_space<vmem>>, %arg12: memref<128x128xbf16, #tpu.memory_space<vmem>>, %arg13: memref<1x128xf32, #tpu.memory_space<vmem>>, %arg14: memref<8x128xf32, #tpu.memory_space<vmem>>, %arg15: memref<8x128xf32, #tpu.memory_space<vmem>>, %arg16: memref<8x128xf32, #tpu.memory_space<vmem>>) attributes {dimension_semantics = [#tpu.dimension_semantics<arbitrary>], iteration_bounds = array<i64: 1>, scalar_prefetch = 0 : i64, scratch_operands = 1 : i64, tpu.core_type = #tpu.core_type<tc>, window_params = [{pipeline_mode = #tpu.pipeline_mode<synchronous>, transform_indices = @transform_0, window_bounds = array<i64: 8, 128>}, {pipeline_mode = #tpu.pipeline_mode<synchronous>, transform_indices = @transform_1, window_bounds = array<i64: 8, 128>}, {pipeline_mode = #tpu.pipeline_mode<synchronous>, transform_indices = @transform_2, window_bounds = array<i64: 128, 384>}, {pipeline_mode = #tpu.pipeline_mode<synchronous>, transform_indices = @transform_3, window_bounds = array<i64: 128, 384>}, {pipeline_mode = #tpu.pipeline_mode<synchronous>, transform_indices = @transform_4, window_bounds = array<i64: 1, 384>}, {pipeline_mode = #tpu.pipeline_mode<synchronous>, transform_indices = @transform_5, window_bounds = array<i64: 1, 384>}, {pipeline_mode = #tpu.pipeline_mode<synchronous>, transform_indices = @transform_6, window_bounds = array<i64: 8, 8, 128>}, {pipeline_mode = #tpu.pipeline_mode<synchronous>, transform_indices = @transform_7, window_bounds = array<i64: 8, 128, 8>}, {pipeline_mode = #tpu.pipeline_mode<synchronous>, transform_indices = @transform_8, window_bounds = array<i64: 128, 128>}, {pipeline_mode = #tpu.pipeline_mode<synchronous>, transform_indices = @transform_9, window_bounds = array<i64: 128, 128>}, {pipeline_mode = #tpu.pipeline_mode<synchronous>, transform_indices = @transform_10, window_bounds = array<i64: 1, 128>}, {transform_indices = @transform_11, window_bounds = array<i64: 128, 128>}, {transform_indices = @transform_12, window_bounds = array<i64: 1, 128>}, {transform_indices = @transform_13, window_bounds = array<i64: 8, 128>}, {pipeline_mode = #tpu.pipeline_mode<synchronous>, transform_indices = @transform_14, window_bounds = array<i64: 8, 128>}]} {
    %c0_i32 = arith.constant 0 : i32
    %0 = arith.cmpi eq, %arg0, %c0_i32 : i32
    %1 = arith.extui %0 : i1 to i32
    %c0_i32_0 = arith.constant 0 : i32
    %2 = arith.cmpi ne, %1, %c0_i32_0 : i32
    scf.if %2 {
      %c0_8 = arith.constant 0 : index
      %c0_9 = arith.constant 0 : index
      %11 = vector.load %arg1[%c0_8, %c0_9] : memref<8x128xf32, #tpu.memory_space<vmem>>, vector<8x128xf32>
      %c0_10 = arith.constant 0 : index
      %c0_11 = arith.constant 0 : index
      %12 = vector.load %arg2[%c0_10, %c0_11] : memref<8x128xf32, #tpu.memory_space<vmem>>, vector<8x128xf32>
      %c0_12 = arith.constant 0 : index
      %c0_13 = arith.constant 0 : index
      %13 = vector.load %arg3[%c0_12, %c0_13] : memref<128x384xf32, #tpu.memory_space<vmem>>, vector<128x384xf32>
      %cst_14 = arith.constant dense<0.000000e+00> : vector<8x384xf32>
      %14 = tpu.matmul %11, %13, %cst_14 {dimension_numbers = #tpu.dot_dimension_numbers<[1], [0], [0], [1], [0, 0, 1, 1], [], []>} : vector<8x128xf32>, vector<128x384xf32>, vector<8x384xf32> -> vector<8x384xf32>
      %c0_15 = arith.constant 0 : index
      %c0_16 = arith.constant 0 : index
      %15 = vector.load %arg5[%c0_15, %c0_16] : memref<1x384xf32, #tpu.memory_space<vmem>>, vector<1x384xf32>
      %16 = vector.broadcast %15 : vector<1x384xf32> to vector<8x384xf32>
      %17 = arith.addf %14, %16 : vector<8x384xf32>
      %c0_17 = arith.constant 0 : index
      %c0_18 = arith.constant 0 : index
      %18 = vector.load %arg4[%c0_17, %c0_18] : memref<128x384xf32, #tpu.memory_space<vmem>>, vector<128x384xf32>
      %cst_19 = arith.constant dense<0.000000e+00> : vector<8x384xf32>
      %19 = tpu.matmul %12, %18, %cst_19 {dimension_numbers = #tpu.dot_dimension_numbers<[1], [0], [0], [1], [0, 0, 1, 1], [], []>} : vector<8x128xf32>, vector<128x384xf32>, vector<8x384xf32> -> vector<8x384xf32>
      %c0_20 = arith.constant 0 : index
      %c0_21 = arith.constant 0 : index
      %20 = vector.load %arg6[%c0_20, %c0_21] : memref<1x384xf32, #tpu.memory_space<vmem>>, vector<1x384xf32>
      %21 = vector.broadcast %20 : vector<1x384xf32> to vector<8x384xf32>
      %22 = arith.addf %19, %21 : vector<8x384xf32>
      %23 = vector.extract_strided_slice %17 {offsets = [0, 0], sizes = [8, 128], strides = [1, 1]} : vector<8x384xf32> to vector<8x128xf32>
      %24 = vector.extract_strided_slice %22 {offsets = [0, 0], sizes = [8, 128], strides = [1, 1]} : vector<8x384xf32> to vector<8x128xf32>
      %25 = arith.addf %23, %24 : vector<8x128xf32>
      %26 = arith.negf %25 : vector<8x128xf32>
      %27 = math.exp %26 : vector<8x128xf32>
      %cst_22 = arith.constant 1.000000e+00 : f32
      %28 = vector.broadcast %cst_22 : f32 to vector<8x128xf32>
      %29 = arith.addf %28, %27 : vector<8x128xf32>
      %30 = arith.divf %28, %29 : vector<8x128xf32>
      %31 = vector.extract_strided_slice %17 {offsets = [0, 128], sizes = [8, 128], strides = [1, 1]} : vector<8x384xf32> to vector<8x128xf32>
      %32 = vector.extract_strided_slice %22 {offsets = [0, 128], sizes = [8, 128], strides = [1, 1]} : vector<8x384xf32> to vector<8x128xf32>
      %33 = arith.addf %31, %32 : vector<8x128xf32>
      %34 = arith.negf %33 : vector<8x128xf32>
      %35 = math.exp %34 : vector<8x128xf32>
      %cst_23 = arith.constant 1.000000e+00 : f32
      %36 = vector.broadcast %cst_23 : f32 to vector<8x128xf32>
      %37 = arith.addf %36, %35 : vector<8x128xf32>
      %38 = arith.divf %36, %37 : vector<8x128xf32>
      %39 = vector.extract_strided_slice %17 {offsets = [0, 256], sizes = [8, 128], strides = [1, 1]} : vector<8x384xf32> to vector<8x128xf32>
      %40 = vector.extract_strided_slice %22 {offsets = [0, 256], sizes = [8, 128], strides = [1, 1]} : vector<8x384xf32> to vector<8x128xf32>
      %41 = arith.mulf %30, %40 : vector<8x128xf32>
      %42 = arith.addf %39, %41 : vector<8x128xf32>
      %43 = math.tanh %42 : vector<8x128xf32>
      %cst_24 = arith.constant 1.000000e+00 : f32
      %44 = vector.broadcast %cst_24 : f32 to vector<8x128xf32>
      %45 = arith.subf %44, %38 : vector<8x128xf32>
      %46 = arith.mulf %45, %43 : vector<8x128xf32>
      %47 = arith.mulf %38, %12 : vector<8x128xf32>
      %48 = arith.addf %46, %47 : vector<8x128xf32>
      %c0_25 = arith.constant 0 : index
      %c0_26 = arith.constant 0 : index
      %49 = vector.load %arg15[%c0_25, %c0_26] : memref<8x128xf32, #tpu.memory_space<vmem>>, vector<8x128xf32>
      tpu.vector_store %arg15[%c0_25, %c0_26], %48 {strides = array<i32>} : memref<8x128xf32, #tpu.memory_space<vmem>>, vector<8x128xf32>,
      %50 = vector.shape_cast %48 : vector<8x128xf32> to vector<8x1x128xf32>
      %c0_27 = arith.constant 0 : index
      %c0_28 = arith.constant 0 : index
      %c0_29 = arith.constant 0 : index
      %51 = vector.load %arg8[%c0_27, %c0_28, %c0_29] : memref<8x128x8xf32, #tpu.memory_space<vmem>>, vector<8x128x8xf32>
      "tpu.trace_start"() <{level = 10 : i32, message = "bqh,bhl->bql"}> : () -> ()
      %cst_30 = arith.constant dense<0.000000e+00> : vector<8x1x8xf32>
      %52 = tpu.matmul %50, %51, %cst_30 {dimension_numbers = #tpu.dot_dimension_numbers<[2], [1], [1], [2], [0, 0, 0, 1, 1, 2], [0], [0]>} : vector<8x1x128xf32>, vector<8x128x8xf32>, vector<8x1x8xf32> -> vector<8x1x8xf32>
      "tpu.trace_stop"() : () -> ()
      %cst_31 = arith.constant dense<0xFF800000> : vector<8x1xf32>
      %53 = vector.multi_reduction <maximumf>, %52, %cst_31 [2] : vector<8x1x8xf32> to vector<8x1xf32>
      %54 = vector.shape_cast %53 : vector<8x1xf32> to vector<8x1x1xf32>
      %55 = vector.broadcast %54 : vector<8x1x1xf32> to vector<8x1x8xf32>
      %56 = arith.subf %52, %55 : vector<8x1x8xf32>
      %57 = math.exp %56 : vector<8x1x8xf32>
      %cst_32 = arith.constant dense<0.000000e+00> : vector<8x1xf32>
      %58 = vector.multi_reduction <add>, %57, %cst_32 [2] : vector<8x1x8xf32> to vector<8x1xf32>
      %59 = vector.shape_cast %58 : vector<8x1xf32> to vector<8x1x1xf32>
      %60 = tpu.reciprocal %59 {approx = true} : vector<8x1x1xf32> -> vector<8x1x1xf32>
      %61 = vector.broadcast %60 : vector<8x1x1xf32> to vector<8x1x8xf32>
      %62 = arith.mulf %57, %61 : vector<8x1x8xf32>
      %c0_33 = arith.constant 0 : index
      %c0_34 = arith.constant 0 : index
      %c0_35 = arith.constant 0 : index
      %63 = vector.load %arg7[%c0_33, %c0_34, %c0_35] : memref<8x8x128xf32, #tpu.memory_space<vmem>>, vector<8x8x128xf32>
      "tpu.trace_start"() <{level = 10 : i32, message = "bql,blh->bqh"}> : () -> ()
      %cst_36 = arith.constant dense<0.000000e+00> : vector<8x1x128xf32>
      %64 = tpu.matmul %62, %63, %cst_36 {dimension_numbers = #tpu.dot_dimension_numbers<[2], [1], [1], [2], [0, 0, 0, 1, 1, 2], [0], [0]>} : vector<8x1x8xf32>, vector<8x8x128xf32>, vector<8x1x128xf32> -> vector<8x1x128xf32>
      "tpu.trace_stop"() : () -> ()
      %65 = vector.shape_cast %64 : vector<8x1x128xf32> to vector<8x128xf32>
      %c0_37 = arith.constant 0 : index
      %c0_38 = arith.constant 0 : index
      %66 = vector.load %arg9[%c0_37, %c0_38] : memref<128x128xf32, #tpu.memory_space<vmem>>, vector<128x128xf32>
      %cst_39 = arith.constant dense<0.000000e+00> : vector<8x128xf32>
      %67 = tpu.matmul %48, %66, %cst_39 {dimension_numbers = #tpu.dot_dimension_numbers<[1], [0], [0], [1], [0, 0, 1, 1], [], []>} : vector<8x128xf32>, vector<128x128xf32>, vector<8x128xf32> -> vector<8x128xf32>
      %c0_40 = arith.constant 0 : index
      %c0_41 = arith.constant 0 : index
      %68 = vector.load %arg10[%c0_40, %c0_41] : memref<128x128xf32, #tpu.memory_space<vmem>>, vector<128x128xf32>
      %cst_42 = arith.constant dense<0.000000e+00> : vector<8x128xf32>
      %69 = tpu.matmul %65, %68, %cst_42 {dimension_numbers = #tpu.dot_dimension_numbers<[1], [0], [0], [1], [0, 0, 1, 1], [], []>} : vector<8x128xf32>, vector<128x128xf32>, vector<8x128xf32> -> vector<8x128xf32>
      %70 = arith.addf %67, %69 : vector<8x128xf32>
      %c0_43 = arith.constant 0 : index
      %c0_44 = arith.constant 0 : index
      %71 = vector.load %arg11[%c0_43, %c0_44] : memref<1x128xf32, #tpu.memory_space<vmem>>, vector<1x128xf32>
      %72 = vector.broadcast %71 : vector<1x128xf32> to vector<8x128xf32>
      %73 = arith.addf %70, %72 : vector<8x128xf32>
      %74 = math.tanh %73 : vector<8x128xf32>
      %c0_45 = arith.constant 0 : index
      %c0_46 = arith.constant 0 : index
      %75 = vector.load %arg16[%c0_45, %c0_46] : memref<8x128xf32, #tpu.memory_space<vmem>>, vector<8x128xf32>
      tpu.vector_store %arg16[%c0_45, %c0_46], %74 {strides = array<i32>} : memref<8x128xf32, #tpu.memory_space<vmem>>, vector<8x128xf32>,
    } else {
    }
    %c0 = arith.constant 0 : index
    %c0_1 = arith.constant 0 : index
    %3 = vector.load %arg16[%c0, %c0_1] : memref<8x128xf32, #tpu.memory_space<vmem>>, vector<8x128xf32>
    %4 = arith.truncf %3 : vector<8x128xf32> to vector<8x128xbf16>
    %c0_2 = arith.constant 0 : index
    %c0_3 = arith.constant 0 : index
    %5 = vector.load %arg12[%c0_2, %c0_3] : memref<128x128xbf16, #tpu.memory_space<vmem>>, vector<128x128xbf16>
    %cst = arith.constant dense<0.000000e+00> : vector<8x128xf32>
    %6 = tpu.matmul %4, %5, %cst {dimension_numbers = #tpu.dot_dimension_numbers<[1], [0], [0], [1], [0, 0, 1, 1], [], []>} : vector<8x128xbf16>, vector<128x128xbf16>, vector<8x128xf32> -> vector<8x128xf32>
    %c0_4 = arith.constant 0 : index
    %c0_5 = arith.constant 0 : index
    %7 = vector.load %arg13[%c0_4, %c0_5] : memref<1x128xf32, #tpu.memory_space<vmem>>, vector<1x128xf32>
    %8 = vector.broadcast %7 : vector<1x128xf32> to vector<8x128xf32>
    %9 = arith.addf %6, %8 : vector<8x128xf32>
    %c0_6 = arith.constant 0 : index
    %c0_7 = arith.constant 0 : index
    %10 = vector.load %arg14[%c0_6, %c0_7] : memref<8x128xf32, #tpu.memory_space<vmem>>, vector<8x128xf32>
    tpu.vector_store %arg14[%c0_6, %c0_7], %9 {strides = array<i32>} : memref<8x128xf32, #tpu.memory_space<vmem>>, vector<8x128xf32>,
    return
  }
  func.func @transform_0(%arg0: i32) -> (i32, i32) {
    %c0_i32 = arith.constant 0 : i32
    %c0_i32_0 = arith.constant 0 : i32
    %c0_i32_1 = arith.constant 0 : i32
    return %c0_i32, %c0_i32_0 : i32, i32
  }
  func.func @transform_1(%arg0: i32) -> (i32, i32) {
    %c0_i32 = arith.constant 0 : i32
    %c0_i32_0 = arith.constant 0 : i32
    %c0_i32_1 = arith.constant 0 : i32
    return %c0_i32, %c0_i32_0 : i32, i32
  }
  func.func @transform_2(%arg0: i32) -> (i32, i32) {
    %c0_i32 = arith.constant 0 : i32
    %c0_i32_0 = arith.constant 0 : i32
    %c0_i32_1 = arith.constant 0 : i32
    return %c0_i32, %c0_i32_0 : i32, i32
  }
  func.func @transform_3(%arg0: i32) -> (i32, i32) {
    %c0_i32 = arith.constant 0 : i32
    %c0_i32_0 = arith.constant 0 : i32
    %c0_i32_1 = arith.constant 0 : i32
    return %c0_i32, %c0_i32_0 : i32, i32
  }
  func.func @transform_4(%arg0: i32) -> (i32, i32) {
    %c0_i32 = arith.constant 0 : i32
    %c0_i32_0 = arith.constant 0 : i32
    %c0_i32_1 = arith.constant 0 : i32
    return %c0_i32, %c0_i32_0 : i32, i32
  }
  func.func @transform_5(%arg0: i32) -> (i32, i32) {
    %c0_i32 = arith.constant 0 : i32
    %c0_i32_0 = arith.constant 0 : i32
    %c0_i32_1 = arith.constant 0 : i32
    return %c0_i32, %c0_i32_0 : i32, i32
  }
  func.func @transform_6(%arg0: i32) -> (i32, i32, i32) {
    %c0_i32 = arith.constant 0 : i32
    %c0_i32_0 = arith.constant 0 : i32
    %c0_i32_1 = arith.constant 0 : i32
    %c0_i32_2 = arith.constant 0 : i32
    return %c0_i32, %c0_i32_0, %c0_i32_1 : i32, i32, i32
  }
  func.func @transform_7(%arg0: i32) -> (i32, i32, i32) {
    %c0_i32 = arith.constant 0 : i32
    %c0_i32_0 = arith.constant 0 : i32
    %c0_i32_1 = arith.constant 0 : i32
    %c0_i32_2 = arith.constant 0 : i32
    return %c0_i32, %c0_i32_0, %c0_i32_1 : i32, i32, i32
  }
  func.func @transform_8(%arg0: i32) -> (i32, i32) {
    %c0_i32 = arith.constant 0 : i32
    %c0_i32_0 = arith.constant 0 : i32
    %c0_i32_1 = arith.constant 0 : i32
    return %c0_i32, %c0_i32_0 : i32, i32
  }
  func.func @transform_9(%arg0: i32) -> (i32, i32) {
    %c0_i32 = arith.constant 0 : i32
    %c0_i32_0 = arith.constant 0 : i32
    %c0_i32_1 = arith.constant 0 : i32
    return %c0_i32, %c0_i32_0 : i32, i32
  }
  func.func @transform_10(%arg0: i32) -> (i32, i32) {
    %c0_i32 = arith.constant 0 : i32
    %c0_i32_0 = arith.constant 0 : i32
    %c0_i32_1 = arith.constant 0 : i32
    return %c0_i32, %c0_i32_0 : i32, i32
  }
  func.func @transform_11(%arg0: i32) -> (i32, i32) {
    %c0_i32 = arith.constant 0 : i32
    %c0_i32_0 = arith.constant 0 : i32
    return %c0_i32, %arg0 : i32, i32
  }
  func.func @transform_12(%arg0: i32) -> (i32, i32) {
    %c0_i32 = arith.constant 0 : i32
    %c0_i32_0 = arith.constant 0 : i32
    return %c0_i32, %arg0 : i32, i32
  }
  func.func @transform_13(%arg0: i32) -> (i32, i32) {
    %c0_i32 = arith.constant 0 : i32
    %c0_i32_0 = arith.constant 0 : i32
    return %c0_i32, %arg0 : i32, i32
  }
  func.func @transform_14(%arg0: i32) -> (i32, i32) {
    %c0_i32 = arith.constant 0 : i32
    %c0_i32_0 = arith.constant 0 : i32
    %c0_i32_1 = arith.constant 0 : i32
    return %c0_i32, %c0_i32_0 : i32, i32
  }
}

</mosaic_0001>

<llo_original>
// kernel: luong_decoder_forward.1
$region0: #{luong_decoder_forward.1}
  #allocation0 [shape = 'u32[]', space=smem, size = 0x4, offset = 0x4, fixed_abs, tag = 'smem constant byte address 0x4 - core index']
  #allocation1 [shape = 'u32[144,128]{1,0:T(1,128)}', space=vmem, size = 0x12000, scoped, tag = 'internal scratch']
  #allocation2 [shape = 'f32[8,128]{1,0:T(8,128)}', space=vmem, size = 0x1000, scoped, tag = 'scratch operand']
  %s0 = inlined_call_operand.vmem [shape: f32[8,128], index: 0, kind: input, shape index: {}]
  %s1 = inlined_call_operand.vmem [shape: f32[8,128], index: 1, kind: input, shape index: {}, may-alias: {1,14}]
  %s2 = inlined_call_operand.vmem [shape: f32[128,384], index: 2, kind: input, shape index: {}]
  %s3 = inlined_call_operand.vmem [shape: f32[128,384], index: 3, kind: input, shape index: {}]
  %s4 = inlined_call_operand.vmem [shape: f32[1,384], index: 4, kind: input, shape index: {}]
  %s5 = inlined_call_operand.vmem [shape: f32[1,384], index: 5, kind: input, shape index: {}]
  %s6 = inlined_call_operand.vmem [shape: f32[8,8,128], index: 6, kind: input, shape index: {}]
  %s7 = inlined_call_operand.vmem [shape: f32[8,128,8], index: 7, kind: input, shape index: {}]
  %s8 = inlined_call_operand.vmem [shape: f32[128,128], index: 8, kind: input, shape index: {}]
  %s9 = inlined_call_operand.vmem [shape: f32[128,128], index: 9, kind: input, shape index: {}]
  %s10 = inlined_call_operand.vmem [shape: f32[1,128], index: 10, kind: input, shape index: {}]
  %s11 = inlined_call_operand.vmem [shape: bf16[128,128], index: 11, kind: input, shape index: {}]
  %s12 = inlined_call_operand.vmem [shape: f32[1,128], index: 12, kind: input, shape index: {}]
  %s13 = inlined_call_operand.vmem [shape: f32[8,128], index: 13, kind: output, shape index: {0}]
  %s14 = inlined_call_operand.vmem [shape: f32[8,128], index: 14, kind: output, shape index: {1}, may-alias: {1,14}]
  %15 = xla_tuple %s13, %s14
  %s16 = sld [smem:[#allocation0]]
  $region74: #{luong_decoder_forward.1} parent=0
    _
  %s18 = ssub.s32 1, %s16
  %s19 = scalar_select 0, %s18, %s16
  // Predicated region
  $region2: #{luong_decoder_forward.1} parent=0 // pred_check
    _
  $region3: #{luong_decoder_forward.1} parent=0 // pred_check_branch
    %21 = sbr.rel (0) target = $region5
  $region4: #{luong_decoder_forward.1} parent=0 // pred_region
    _
  $region5: #{luong_decoder_forward.1} parent=0 // pred_fallthru
    _
  // Predicated region
  $region6: #{luong_decoder_forward.1} parent=0 // pred_check
    _
  $region7: #{luong_decoder_forward.1} parent=0 // pred_check_branch
    %23 = sbr.rel (0) target = $region9
  $region8: #{luong_decoder_forward.1} parent=0 // pred_region
    _
  $region9: #{luong_decoder_forward.1} parent=0 // pred_fallthru
    _
  // Predicated region
  $region10: #{luong_decoder_forward.1} parent=0 // pred_check
    _
  $region11: #{luong_decoder_forward.1} parent=0 // pred_check_branch
    %25 = sbr.rel (0) target = $region13
  $region12: #{luong_decoder_forward.1} parent=0 // pred_region
    _
  $region13: #{luong_decoder_forward.1} parent=0 // pred_fallthru
    _
  // Predicated region
  $region14: #{luong_decoder_forward.1} parent=0 // pred_check
    _
  $region15: #{luong_decoder_forward.1} parent=0 // pred_check_branch
    %27 = sbr.rel (0) target = $region17
  $region16: #{luong_decoder_forward.1} parent=0 // pred_region
    _
  $region17: #{luong_decoder_forward.1} parent=0 // pred_fallthru
    _
  // Predicated region
  $region18: #{luong_decoder_forward.1} parent=0 // pred_check
    _
  $region19: #{luong_decoder_forward.1} parent=0 // pred_check_branch
    %29 = sbr.rel (0) target = $region21
  $region20: #{luong_decoder_forward.1} parent=0 // pred_region
    _
  $region21: #{luong_decoder_forward.1} parent=0 // pred_fallthru
    _
  // Predicated region
  $region22: #{luong_decoder_forward.1} parent=0 // pred_check
    _
  $region23: #{luong_decoder_forward.1} parent=0 // pred_check_branch
    %31 = sbr.rel (0) target = $region25
  $region24: #{luong_decoder_forward.1} parent=0 // pred_region
    _
  $region25: #{luong_decoder_forward.1} parent=0 // pred_fallthru
    _
  // Predicated region
  $region26: #{luong_decoder_forward.1} parent=0 // pred_check
    _
  $region27: #{luong_decoder_forward.1} parent=0 // pred_check_branch
    %33 = sbr.rel (0) target = $region29
  $region28: #{luong_decoder_forward.1} parent=0 // pred_region
    _
  $region29: #{luong_decoder_forward.1} parent=0 // pred_fallthru
    _
  // Predicated region
  $region30: #{luong_decoder_forward.1} parent=0 // pred_check
    _
  $region31: #{luong_decoder_forward.1} parent=0 // pred_check_branch
    %35 = sbr.rel (0) target = $region33
  $region32: #{luong_decoder_forward.1} parent=0 // pred_region
    _
  $region33: #{luong_decoder_forward.1} parent=0 // pred_fallthru
    _
  // Predicated region
  $region34: #{luong_decoder_forward.1} parent=0 // pred_check
    _
  $region35: #{luong_decoder_forward.1} parent=0 // pred_check_branch
    %37 = sbr.rel (0) target = $region37
  $region36: #{luong_decoder_forward.1} parent=0 // pred_region
    _
  $region37: #{luong_decoder_forward.1} parent=0 // pred_fallthru
    _
  // Predicated region
  $region38: #{luong_decoder_forward.1} parent=0 // pred_check
    _
  $region39: #{luong_decoder_forward.1} parent=0 // pred_check_branch
    %39 = sbr.rel (0) target = $region41
  $region40: #{luong_decoder_forward.1} parent=0 // pred_region
    _
  $region41: #{luong_decoder_forward.1} parent=0 // pred_fallthru
    _
  // Predicated region
  $region42: #{luong_decoder_forward.1} parent=0 // pred_check
    _
  $region43: #{luong_decoder_forward.1} parent=0 // pred_check_branch
    %41 = sbr.rel (0) target = $region45
  $region44: #{luong_decoder_forward.1} parent=0 // pred_region
    _
  $region45: #{luong_decoder_forward.1} parent=0 // pred_fallthru
    _
  // Predicated region
  $region46: #{luong_decoder_forward.1} parent=0 // pred_check
    _
  $region47: #{luong_decoder_forward.1} parent=0 // pred_check_branch
    %43 = sbr.rel (0) target = $region49
  $region48: #{luong_decoder_forward.1} parent=0 // pred_region
    _
  $region49: #{luong_decoder_forward.1} parent=0 // pred_fallthru
    _
  // Predicated region
  $region50: #{luong_decoder_forward.1} parent=0 // pred_check
    _
  $region51: #{luong_decoder_forward.1} parent=0 // pred_check_branch
    %45 = sbr.rel (0) target = $region53
  $region52: #{luong_decoder_forward.1} parent=0 // pred_region
    _
  $region53: #{luong_decoder_forward.1} parent=0 // pred_fallthru
    _
  %p47 = scmp.eq.s32.totalorder 0, 0
  // Predicated region
  $region54: #{luong_decoder_forward.1} parent=0 // pred_check
    %p48 = pneg %p47
  $region55: #{luong_decoder_forward.1} parent=0 // pred_check_branch
    %50 = sbr.rel (%p48) target = $region57
  $region56: #{luong_decoder_forward.1} parent=0 // pred_region
    %v51 = vld [vmem:[%s0] sm:$0xff]
    %v52 = vld [vmem:[%s1] sm:$0xff]
    %v53 = vld [vmem:[%s2] sm:$0xff]
    %v54 = vld [vmem:[%s2 + $0x8] sm:$0xff]
    %v55 = vld [vmem:[%s2 + $0x10] sm:$0xff]
    %v56 = vld [vmem:[%s2 + $0x18] sm:$0xff]
    %v57 = vld [vmem:[%s2 + $0x20] sm:$0xff]
    %v58 = vld [vmem:[%s2 + $0x28] sm:$0xff]
    %v59 = vld [vmem:[%s2 + $0x30] sm:$0xff]
    %v60 = vld [vmem:[%s2 + $0x38] sm:$0xff]
    %v61 = vld [vmem:[%s2 + $0x40] sm:$0xff]
    %v62 = vld [vmem:[%s2 + $0x48] sm:$0xff]
    %v63 = vld [vmem:[%s2 + $0x50] sm:$0xff]
    %v64 = vld [vmem:[%s2 + $0x58] sm:$0xff]
    %v65 = vld [vmem:[%s2 + $0x60] sm:$0xff]
    %v66 = vld [vmem:[%s2 + $0x68] sm:$0xff]
    %v67 = vld [vmem:[%s2 + $0x70] sm:$0xff]
    %v68 = vld [vmem:[%s2 + $0x78] sm:$0xff]
    %v69 = vld [vmem:[%s2 + $0x80] sm:$0xff]
    %v70 = vld [vmem:[%s2 + $0x88] sm:$0xff]
    %v71 = vld [vmem:[%s2 + $0x90] sm:$0xff]
    %v72 = vld [vmem:[%s2 + $0x98] sm:$0xff]
    %v73 = vld [vmem:[%s2 + $0xa0] sm:$0xff]
    %v74 = vld [vmem:[%s2 + $0xa8] sm:$0xff]
    %v75 = vld [vmem:[%s2 + $0xb0] sm:$0xff]
    %v76 = vld [vmem:[%s2 + $0xb8] sm:$0xff]
    %v77 = vld [vmem:[%s2 + $0xc0] sm:$0xff]
    %v78 = vld [vmem:[%s2 + $0xc8] sm:$0xff]
    %v79 = vld [vmem:[%s2 + $0xd0] sm:$0xff]
    %v80 = vld [vmem:[%s2 + $0xd8] sm:$0xff]
    %v81 = vld [vmem:[%s2 + $0xe0] sm:$0xff]
    %v82 = vld [vmem:[%s2 + $0xe8] sm:$0xff]
    %v83 = vld [vmem:[%s2 + $0xf0] sm:$0xff]
    %v84 = vld [vmem:[%s2 + $0xf8] sm:$0xff]
    %v85 = vld [vmem:[%s2 + $0x100] sm:$0xff]
    %v86 = vld [vmem:[%s2 + $0x108] sm:$0xff]
    %v87 = vld [vmem:[%s2 + $0x110] sm:$0xff]
    %v88 = vld [vmem:[%s2 + $0x118] sm:$0xff]
    %v89 = vld [vmem:[%s2 + $0x120] sm:$0xff]
    %v90 = vld [vmem:[%s2 + $0x128] sm:$0xff]
    %v91 = vld [vmem:[%s2 + $0x130] sm:$0xff]
    %v92 = vld [vmem:[%s2 + $0x138] sm:$0xff]
    %v93 = vld [vmem:[%s2 + $0x140] sm:$0xff]
    %v94 = vld [vmem:[%s2 + $0x148] sm:$0xff]
    %v95 = vld [vmem:[%s2 + $0x150] sm:$0xff]
    %v96 = vld [vmem:[%s2 + $0x158] sm:$0xff]
    %v97 = vld [vmem:[%s2 + $0x160] sm:$0xff]
    %v98 = vld [vmem:[%s2 + $0x168] sm:$0xff]
    %v99 = vld [vmem:[%s2 + $0x170] sm:$0xff]
    %v100 = vld [vmem:[%s2 + $0x178] sm:$0xff]
    %v101 = vld [vmem:[%s4] sm:$0x7]
    %v103 = vlaneseq
    %v104 = vshrl.u32 %v103, 7
    %v105 = vsub.s32 0, %v104
    %v106 = vrot.slane %v101, %v105
    %v107 = vlaneseq
    %v108 = vshrl.u32 %v107, 7
    %v109 = vsub.s32 1, %v108
    %v110 = vrot.slane %v101, %v109
    %v111 = vlaneseq
    %v112 = vshrl.u32 %v111, 7
    %v113 = vsub.s32 2, %v112
    %v114 = vrot.slane %v101, %v113
    %118 = vmatprep.subr.mxu0 %v99
    %119 = vmatpush1.msra.mxu0 %v98
    %120 = vmatprep.subr.mxu0 %v96
    %121 = vmatpush1.msra.mxu0 %v95
    %122 = vmatprep.subr.mxu0 %v93
    %123 = vmatpush1.msra.mxu0 %v92
    %124 = vmatprep.subr.mxu0 %v90
    %125 = vmatpush1.msra.mxu0 %v89
    %126 = vmatprep.subr.mxu0 %v87
    %127 = vmatpush1.msra.mxu0 %v86
    %128 = vmatprep.subr.mxu0 %v84
    %129 = vmatpush1.msra.mxu0 %v83
    %130 = vmatprep.subr.mxu0 %v81
    %131 = vmatpush1.msra.mxu0 %v80
    %132 = vmatprep.subr.mxu0 %v78
    %133 = vmatpush1.msra.mxu0 %v77
    %134 = vmatprep.subr.mxu0 %v75
    %135 = vmatpush1.msra.mxu0 %v74
    %136 = vmatprep.subr.mxu0 %v72
    %137 = vmatpush1.msra.mxu0 %v71
    %138 = vmatprep.subr.mxu0 %v69
    %139 = vmatpush1.msra.mxu0 %v68
    %140 = vmatprep.subr.mxu0 %v66
    %141 = vmatpush1.msra.mxu0 %v65
    %142 = vmatprep.subr.mxu0 %v63
    %143 = vmatpush1.msra.mxu0 %v62
    %144 = vmatprep.subr.mxu0 %v60
    %145 = vmatpush1.msra.mxu0 %v59
    %146 = vmatprep.subr.mxu0 %v57
    %147 = vmatpush1.msra.mxu0 %v56
    %148 = vmatprep.subr.mxu0 %v54
    %149 = vmatpush1.msra.mxu0 %v53
    %150 = vmatprep.subr.mxu0 0.0
    %151 = vmatpush2.msra.mxu0 0.0
    %152 = vmatprep.subr.mxu0 0.0
    %153 = vmatpush2.msra.mxu0 0.0
    %154 = vmatprep.subr.mxu0 0.0
    %155 = vmatpush2.msra.mxu0 0.0
    %156 = vmatprep.subr.mxu0 0.0
    %157 = vmatpush2.msra.mxu0 0.0
    %158 = vmatprep.subr.mxu0 0.0
    %159 = vmatpush2.msra.mxu0 0.0
    %160 = vmatprep.subr.mxu0 0.0
    %161 = vmatpush2.msra.mxu0 0.0
    %162 = vmatprep.subr.mxu0 0.0
    %163 = vmatpush2.msra.mxu0 0.0
    %164 = vmatprep.subr.mxu0 0.0
    %165 = vmatpush2.msra.mxu0 0.0
    %166 = vmatprep.subr.mxu0 0.0
    %167 = vmatpush2.msra.mxu0 0.0
    %168 = vmatprep.subr.mxu0 0.0
    %169 = vmatpush2.msra.mxu0 0.0
    %170 = vmatprep.subr.mxu0 0.0
    %171 = vmatpush2.msra.mxu0 0.0
    %172 = vmatprep.subr.mxu0 0.0
    %173 = vmatpush2.msra.mxu0 0.0
    %174 = vmatprep.subr.mxu0 0.0
    %175 = vmatpush2.msra.mxu0 0.0
    %176 = vmatprep.subr.mxu0 0.0
    %177 = vmatpush2.msra.mxu0 0.0
    %178 = vmatprep.subr.mxu0 0.0
    %179 = vmatpush2.msra.mxu0 0.0
    %180 = vmatprep.subr.mxu0 0.0
    %181 = vmatpush2.msra.mxu0 0.0
    %182 = vmatprep.mubr.f32.mxu0 0.0
    %183 = vmatmul.mubr.f32.gmra.mxu0 %v51
    %v184 = vpop.f32.mrf.mxu0
    %v185 = vadd.f32 %v106, %v184
    %v186 = vpop.f32.mrf.mxu0
    %v187 = vadd.f32 %v110, %v186
    %188 = vdwg.mxu0
    %189 = vmatprep.subr.mxu0 0.0
    %190 = vmatpush1.msra.mxu0 %v100
    %191 = vmatprep.subr.mxu0 0.0
    %192 = vmatpush1.msra.mxu0 %v97
    %193 = vmatprep.subr.mxu0 0.0
    %194 = vmatpush1.msra.mxu0 %v94
    %195 = vmatprep.subr.mxu0 0.0
    %196 = vmatpush1.msra.mxu0 %v91
    %197 = vmatprep.subr.mxu0 0.0
    %198 = vmatpush1.msra.mxu0 %v88
    %199 = vmatprep.subr.mxu0 0.0
    %200 = vmatpush1.msra.mxu0 %v85
    %201 = vmatprep.subr.mxu0 0.0
    %202 = vmatpush1.msra.mxu0 %v82
    %203 = vmatprep.subr.mxu0 0.0
    %204 = vmatpush1.msra.mxu0 %v79
    %205 = vmatprep.subr.mxu0 0.0
    %206 = vmatpush1.msra.mxu0 %v76
    %207 = vmatprep.subr.mxu0 0.0
    %208 = vmatpush1.msra.mxu0 %v73
    %209 = vmatprep.subr.mxu0 0.0
    %210 = vmatpush1.msra.mxu0 %v70
    %211 = vmatprep.subr.mxu0 0.0
    %212 = vmatpush1.msra.mxu0 %v67
    %213 = vmatprep.subr.mxu0 0.0
    %214 = vmatpush1.msra.mxu0 %v64
    %215 = vmatprep.subr.mxu0 0.0
    %216 = vmatpush1.msra.mxu0 %v61
    %217 = vmatprep.subr.mxu0 0.0
    %218 = vmatpush1.msra.mxu0 %v58
    %219 = vmatprep.subr.mxu0 0.0
    %220 = vmatpush1.msra.mxu0 %v55
    %221 = vmatprep.subr.mxu0 0.0
    %222 = vmatpush2.msra.mxu0 0.0
    %223 = vmatprep.subr.mxu0 0.0
    %224 = vmatpush2.msra.mxu0 0.0
    %225 = vmatprep.subr.mxu0 0.0
    %226 = vmatpush2.msra.mxu0 0.0
    %227 = vmatprep.subr.mxu0 0.0
    %228 = vmatpush2.msra.mxu0 0.0
    %229 = vmatprep.subr.mxu0 0.0
    %230 = vmatpush2.msra.mxu0 0.0
    %231 = vmatprep.subr.mxu0 0.0
    %232 = vmatpush2.msra.mxu0 0.0
    %233 = vmatprep.subr.mxu0 0.0
    %234 = vmatpush2.msra.mxu0 0.0
    %235 = vmatprep.subr.mxu0 0.0
    %236 = vmatpush2.msra.mxu0 0.0
    %237 = vmatprep.subr.mxu0 0.0
    %238 = vmatpush2.msra.mxu0 0.0
    %239 = vmatprep.subr.mxu0 0.0
    %240 = vmatpush2.msra.mxu0 0.0
    %241 = vmatprep.subr.mxu0 0.0
    %242 = vmatpush2.msra.mxu0 0.0
    %243 = vmatprep.subr.mxu0 0.0
    %244 = vmatpush2.msra.mxu0 0.0
    %245 = vmatprep.subr.mxu0 0.0
    %246 = vmatpush2.msra.mxu0 0.0
    %247 = vmatprep.subr.mxu0 0.0
    %248 = vmatpush2.msra.mxu0 0.0
    %249 = vmatprep.subr.mxu0 0.0
    %250 = vmatpush2.msra.mxu0 0.0
    %251 = vmatprep.subr.mxu0 0.0
    %252 = vmatpush2.msra.mxu0 0.0
    %253 = vmatprep.mubr.f32.mxu0 0.0
    %254 = vmatmul.mubr.f32.gmra.mxu0 %v51
    %v255 = vpop.f32.mrf.mxu0
    %v256 = vadd.f32 %v114, %v255
    %v257 = vpop.f32.mrf.mxu0
    %258 = vdwg.mxu0
    %v259 = vld [vmem:[%s3] sm:$0xff]
    %v260 = vld [vmem:[%s3 + $0x8] sm:$0xff]
    %v261 = vld [vmem:[%s3 + $0x10] sm:$0xff]
    %v262 = vld [vmem:[%s3 + $0x18] sm:$0xff]
    %v263 = vld [vmem:[%s3 + $0x20] sm:$0xff]
    %v264 = vld [vmem:[%s3 + $0x28] sm:$0xff]
    %v265 = vld [vmem:[%s3 + $0x30] sm:$0xff]
    %v266 = vld [vmem:[%s3 + $0x38] sm:$0xff]
    %v267 = vld [vmem:[%s3 + $0x40] sm:$0xff]
    %v268 = vld [vmem:[%s3 + $0x48] sm:$0xff]
    %v269 = vld [vmem:[%s3 + $0x50] sm:$0xff]
    %v270 = vld [vmem:[%s3 + $0x58] sm:$0xff]
    %v271 = vld [vmem:[%s3 + $0x60] sm:$0xff]
    %v272 = vld [vmem:[%s3 + $0x68] sm:$0xff]
    %v273 = vld [vmem:[%s3 + $0x70] sm:$0xff]
    %v274 = vld [vmem:[%s3 + $0x78] sm:$0xff]
    %v275 = vld [vmem:[%s3 + $0x80] sm:$0xff]
    %v276 = vld [vmem:[%s3 + $0x88] sm:$0xff]
    %v277 = vld [vmem:[%s3 + $0x90] sm:$0xff]
    %v278 = vld [vmem:[%s3 + $0x98] sm:$0xff]
    %v279 = vld [vmem:[%s3 + $0xa0] sm:$0xff]
    %v280 = vld [vmem:[%s3 + $0xa8] sm:$0xff]
    %v281 = vld [vmem:[%s3 + $0xb0] sm:$0xff]
    %v282 = vld [vmem:[%s3 + $0xb8] sm:$0xff]
    %v283 = vld [vmem:[%s3 + $0xc0] sm:$0xff]
    %v284 = vld [vmem:[%s3 + $0xc8] sm:$0xff]
    %v285 = vld [vmem:[%s3 + $0xd0] sm:$0xff]
    %v286 = vld [vmem:[%s3 + $0xd8] sm:$0xff]
    %v287 = vld [vmem:[%s3 + $0xe0] sm:$0xff]
    %v288 = vld [vmem:[%s3 + $0xe8] sm:$0xff]
    %v289 = vld [vmem:[%s3 + $0xf0] sm:$0xff]
    %v290 = vld [vmem:[%s3 + $0xf8] sm:$0xff]
    %v291 = vld [vmem:[%s3 + $0x100] sm:$0xff]
    %v292 = vld [vmem:[%s3 + $0x108] sm:$0xff]
    %v293 = vld [vmem:[%s3 + $0x110] sm:$0xff]
    %v294 = vld [vmem:[%s3 + $0x118] sm:$0xff]
    %v295 = vld [vmem:[%s3 + $0x120] sm:$0xff]
    %v296 = vld [vmem:[%s3 + $0x128] sm:$0xff]
    %v297 = vld [vmem:[%s3 + $0x130] sm:$0xff]
    %v298 = vld [vmem:[%s3 + $0x138] sm:$0xff]
    %v299 = vld [vmem:[%s3 + $0x140] sm:$0xff]
    %v300 = vld [vmem:[%s3 + $0x148] sm:$0xff]
    %v301 = vld [vmem:[%s3 + $0x150] sm:$0xff]
    %v302 = vld [vmem:[%s3 + $0x158] sm:$0xff]
    %v303 = vld [vmem:[%s3 + $0x160] sm:$0xff]
    %v304 = vld [vmem:[%s3 + $0x168] sm:$0xff]
    %v305 = vld [vmem:[%s3 + $0x170] sm:$0xff]
    %v306 = vld [vmem:[%s3 + $0x178] sm:$0xff]
    %v307 = vld [vmem:[%s5] sm:$0x7]
    %v309 = vlaneseq
    %v310 = vshrl.u32 %v309, 7
    %v311 = vsub.s32 0, %v310
    %v312 = vrot.slane %v307, %v311
    %v313 = vlaneseq
    %v314 = vshrl.u32 %v313, 7
    %v315 = vsub.s32 1, %v314
    %v316 = vrot.slane %v307, %v315
    %v317 = vlaneseq
    %v318 = vshrl.u32 %v317, 7
    %v319 = vsub.s32 2, %v318
    %v320 = vrot.slane %v307, %v319
    %324 = vmatprep.subr.mxu0 %v305
    %325 = vmatpush1.msra.mxu0 %v304
    %326 = vmatprep.subr.mxu0 %v302
    %327 = vmatpush1.msra.mxu0 %v301
    %328 = vmatprep.subr.mxu0 %v299
    %329 = vmatpush1.msra.mxu0 %v298
    %330 = vmatprep.subr.mxu0 %v296
    %331 = vmatpush1.msra.mxu0 %v295
    %332 = vmatprep.subr.mxu0 %v293
    %333 = vmatpush1.msra.mxu0 %v292
    %334 = vmatprep.subr.mxu0 %v290
    %335 = vmatpush1.msra.mxu0 %v289
    %336 = vmatprep.subr.mxu0 %v287
    %337 = vmatpush1.msra.mxu0 %v286
    %338 = vmatprep.subr.mxu0 %v284
    %339 = vmatpush1.msra.mxu0 %v283
    %340 = vmatprep.subr.mxu0 %v281
    %341 = vmatpush1.msra.mxu0 %v280
    %342 = vmatprep.subr.mxu0 %v278
    %343 = vmatpush1.msra.mxu0 %v277
    %344 = vmatprep.subr.mxu0 %v275
    %345 = vmatpush1.msra.mxu0 %v274
    %346 = vmatprep.subr.mxu0 %v272
    %347 = vmatpush1.msra.mxu0 %v271
    %348 = vmatprep.subr.mxu0 %v269
    %349 = vmatpush1.msra.mxu0 %v268
    %350 = vmatprep.subr.mxu0 %v266
    %351 = vmatpush1.msra.mxu0 %v265
    %352 = vmatprep.subr.mxu0 %v263
    %353 = vmatpush1.msra.mxu0 %v262
    %354 = vmatprep.subr.mxu0 %v260
    %355 = vmatpush1.msra.mxu0 %v259
    %356 = vmatprep.subr.mxu0 0.0
    %357 = vmatpush2.msra.mxu0 0.0
    %358 = vmatprep.subr.mxu0 0.0
    %359 = vmatpush2.msra.mxu0 0.0
    %360 = vmatprep.subr.mxu0 0.0
    %361 = vmatpush2.msra.mxu0 0.0
    %362 = vmatprep.subr.mxu0 0.0
    %363 = vmatpush2.msra.mxu0 0.0
    %364 = vmatprep.subr.mxu0 0.0
    %365 = vmatpush2.msra.mxu0 0.0
    %366 = vmatprep.subr.mxu0 0.0
    %367 = vmatpush2.msra.mxu0 0.0
    %368 = vmatprep.subr.mxu0 0.0
    %369 = vmatpush2.msra.mxu0 0.0
    %370 = vmatprep.subr.mxu0 0.0
    %371 = vmatpush2.msra.mxu0 0.0
    %372 = vmatprep.subr.mxu0 0.0
    %373 = vmatpush2.msra.mxu0 0.0
    %374 = vmatprep.subr.mxu0 0.0
    %375 = vmatpush2.msra.mxu0 0.0
    %376 = vmatprep.subr.mxu0 0.0
    %377 = vmatpush2.msra.mxu0 0.0
    %378 = vmatprep.subr.mxu0 0.0
    %379 = vmatpush2.msra.mxu0 0.0
    %380 = vmatprep.subr.mxu0 0.0
    %381 = vmatpush2.msra.mxu0 0.0
    %382 = vmatprep.subr.mxu0 0.0
    %383 = vmatpush2.msra.mxu0 0.0
    %384 = vmatprep.subr.mxu0 0.0
    %385 = vmatpush2.msra.mxu0 0.0
    %386 = vmatprep.subr.mxu0 0.0
    %387 = vmatpush2.msra.mxu0 0.0
    %388 = vmatprep.mubr.f32.mxu0 0.0
    %389 = vmatmul.mubr.f32.gmra.mxu0 %v52
    %v390 = vpop.f32.mrf.mxu0
    %v391 = vadd.f32 %v312, %v390
    %v392 = vpop.f32.mrf.mxu0
    %v393 = vadd.f32 %v316, %v392
    %394 = vdwg.mxu0
    %395 = vmatprep.subr.mxu0 0.0
    %396 = vmatpush1.msra.mxu0 %v306
    %397 = vmatprep.subr.mxu0 0.0
    %398 = vmatpush1.msra.mxu0 %v303
    %399 = vmatprep.subr.mxu0 0.0
    %400 = vmatpush1.msra.mxu0 %v300
    %401 = vmatprep.subr.mxu0 0.0
    %402 = vmatpush1.msra.mxu0 %v297
    %403 = vmatprep.subr.mxu0 0.0
    %404 = vmatpush1.msra.mxu0 %v294
    %405 = vmatprep.subr.mxu0 0.0
    %406 = vmatpush1.msra.mxu0 %v291
    %407 = vmatprep.subr.mxu0 0.0
    %408 = vmatpush1.msra.mxu0 %v288
    %409 = vmatprep.subr.mxu0 0.0
    %410 = vmatpush1.msra.mxu0 %v285
    %411 = vmatprep.subr.mxu0 0.0
    %412 = vmatpush1.msra.mxu0 %v282
    %413 = vmatprep.subr.mxu0 0.0
    %414 = vmatpush1.msra.mxu0 %v279
    %415 = vmatprep.subr.mxu0 0.0
    %416 = vmatpush1.msra.mxu0 %v276
    %417 = vmatprep.subr.mxu0 0.0
    %418 = vmatpush1.msra.mxu0 %v273
    %419 = vmatprep.subr.mxu0 0.0
    %420 = vmatpush1.msra.mxu0 %v270
    %421 = vmatprep.subr.mxu0 0.0
    %422 = vmatpush1.msra.mxu0 %v267
    %423 = vmatprep.subr.mxu0 0.0
    %424 = vmatpush1.msra.mxu0 %v264
    %425 = vmatprep.subr.mxu0 0.0
    %426 = vmatpush1.msra.mxu0 %v261
    %427 = vmatprep.subr.mxu0 0.0
    %428 = vmatpush2.msra.mxu0 0.0
    %429 = vmatprep.subr.mxu0 0.0
    %430 = vmatpush2.msra.mxu0 0.0
    %431 = vmatprep.subr.mxu0 0.0
    %432 = vmatpush2.msra.mxu0 0.0
    %433 = vmatprep.subr.mxu0 0.0
    %434 = vmatpush2.msra.mxu0 0.0
    %435 = vmatprep.subr.mxu0 0.0
    %436 = vmatpush2.msra.mxu0 0.0
    %437 = vmatprep.subr.mxu0 0.0
    %438 = vmatpush2.msra.mxu0 0.0
    %439 = vmatprep.subr.mxu0 0.0
    %440 = vmatpush2.msra.mxu0 0.0
    %441 = vmatprep.subr.mxu0 0.0
    %442 = vmatpush2.msra.mxu0 0.0
    %443 = vmatprep.subr.mxu0 0.0
    %444 = vmatpush2.msra.mxu0 0.0
    %445 = vmatprep.subr.mxu0 0.0
    %446 = vmatpush2.msra.mxu0 0.0
    %447 = vmatprep.subr.mxu0 0.0
    %448 = vmatpush2.msra.mxu0 0.0
    %449 = vmatprep.subr.mxu0 0.0
    %450 = vmatpush2.msra.mxu0 0.0
    %451 = vmatprep.subr.mxu0 0.0
    %452 = vmatpush2.msra.mxu0 0.0
    %453 = vmatprep.subr.mxu0 0.0
    %454 = vmatpush2.msra.mxu0 0.0
    %455 = vmatprep.subr.mxu0 0.0
    %456 = vmatpush2.msra.mxu0 0.0
    %457 = vmatprep.subr.mxu0 0.0
    %458 = vmatpush2.msra.mxu0 0.0
    %459 = vmatprep.mubr.f32.mxu0 0.0
    %460 = vmatmul.mubr.f32.gmra.mxu0 %v52
    %v461 = vpop.f32.mrf.mxu0
    %v462 = vadd.f32 %v320, %v461
    %v463 = vpop.f32.mrf.mxu0
    %464 = vdwg.mxu0
    %v465 = vadd.f32 %v185, %v391
    %v466 = vxor.u32 %v465, 2147483648
    %v467 = vmul.f32 %v466, 1.442695
    %v468 = vpow.pop %v467
    %v469 = vadd.f32 %v468, 1.0
    %v470 = vrcp.pop %v469
    %v471 = vmul.f32 1.0, %v470
    %v472 = vadd.f32 %v187, %v393
    %v473 = vxor.u32 %v472, 2147483648
    %v474 = vmul.f32 %v473, 1.442695
    %v475 = vpow.pop %v474
    %v476 = vadd.f32 %v475, 1.0
    %v477 = vrcp.pop %v476
    %v478 = vmul.f32 1.0, %v477
    %v479 = vmul.f32 %v471, %v462
    %v480 = vadd.f32 %v256, %v479
    %v481 = vtanh.pop %v480
    %v482 = vsub.f32 1.0, %v478
    %v483 = vmul.f32 %v482, %v481
    %v484 = vmul.f32 %v478, %v52
    %v485 = vadd.f32 %v483, %v484
    %486 = vst [vmem:[%s14] sm:$0xff] %v485
    %v488 = vcombine.high %v485, %v485
    %v490 = vunpack.c.l.s4 1966171168
    %v491 = vunpack.c.0.s8 %v490
    %v492 = vlaneseq
    %v493 = vshrl.u32 %v492, 7
    %v494 = vsub.s32 %v491, %v493
    %v495 = vrot.slane %v485, %v494
    %v497 = vunpack.c.l.s4 1966171168
    %v498 = vunpack.c.0.s8 %v497
    %v499 = vlaneseq
    %v500 = vshrl.u32 %v499, 7
    %v501 = vsub.s32 %v498, %v500
    %v502 = vrot.slane %v488, %v501
    %v503 = vcombine.high %v495, %v495
    %v504 = vcombine.high %v502, %v502
    %v506 = vunpack.c.l.s4 1966171168
    %v507 = vunpack.c.0.s8 %v506
    %v508 = vlaneseq
    %v509 = vshrl.u32 %v508, 7
    %v510 = vsub.s32 %v507, %v509
    %v511 = vrot.slane %v495, %v510
    %v513 = vunpack.c.l.s4 1966171168
    %v514 = vunpack.c.0.s8 %v513
    %v515 = vlaneseq
    %v516 = vshrl.u32 %v515, 7
    %v517 = vsub.s32 %v514, %v516
    %v518 = vrot.slane %v502, %v517
    %v520 = vunpack.c.l.s4 1966171168
    %v521 = vunpack.c.0.s8 %v520
    %v522 = vlaneseq
    %v523 = vshrl.u32 %v522, 7
    %v524 = vsub.s32 %v521, %v523
    %v525 = vrot.slane %v503, %v524
    %v527 = vunpack.c.l.s4 1966171168
    %v528 = vunpack.c.0.s8 %v527
    %v529 = vlaneseq
    %v530 = vshrl.u32 %v529, 7
    %v531 = vsub.s32 %v528, %v530
    %v532 = vrot.slane %v504, %v531
    %v533 = vcombine.high %v511, %v511
    %v534 = vcombine.high %v518, %v518
    %v535 = vcombine.high %v525, %v525
    %v536 = vcombine.high %v532, %v532
    %v545 = vld [vmem:[%s7] sm:$0xff]
    %v546 = vld [vmem:[%s7 + $0x8] sm:$0xff]
    %v547 = vld [vmem:[%s7 + $0x10] sm:$0xff]
    %v548 = vld [vmem:[%s7 + $0x18] sm:$0xff]
    %v549 = vld [vmem:[%s7 + $0x20] sm:$0xff]
    %v550 = vld [vmem:[%s7 + $0x28] sm:$0xff]
    %v551 = vld [vmem:[%s7 + $0x30] sm:$0xff]
    %v552 = vld [vmem:[%s7 + $0x38] sm:$0xff]
    %v553 = vld [vmem:[%s7 + $0x40] sm:$0xff]
    %v554 = vld [vmem:[%s7 + $0x48] sm:$0xff]
    %v555 = vld [vmem:[%s7 + $0x50] sm:$0xff]
    %v556 = vld [vmem:[%s7 + $0x58] sm:$0xff]
    %v557 = vld [vmem:[%s7 + $0x60] sm:$0xff]
    %v558 = vld [vmem:[%s7 + $0x68] sm:$0xff]
    %v559 = vld [vmem:[%s7 + $0x70] sm:$0xff]
    %v560 = vld [vmem:[%s7 + $0x78] sm:$0xff]
    %v561 = vld [vmem:[%s7 + $0x80] sm:$0xff]
    %v562 = vld [vmem:[%s7 + $0x88] sm:$0xff]
    %v563 = vld [vmem:[%s7 + $0x90] sm:$0xff]
    %v564 = vld [vmem:[%s7 + $0x98] sm:$0xff]
    %v565 = vld [vmem:[%s7 + $0xa0] sm:$0xff]
    %v566 = vld [vmem:[%s7 + $0xa8] sm:$0xff]
    %v567 = vld [vmem:[%s7 + $0xb0] sm:$0xff]
    %v568 = vld [vmem:[%s7 + $0xb8] sm:$0xff]
    %v569 = vld [vmem:[%s7 + $0xc0] sm:$0xff]
    %v570 = vld [vmem:[%s7 + $0xc8] sm:$0xff]
    %v571 = vld [vmem:[%s7 + $0xd0] sm:$0xff]
    %v572 = vld [vmem:[%s7 + $0xd8] sm:$0xff]
    %v573 = vld [vmem:[%s7 + $0xe0] sm:$0xff]
    %v574 = vld [vmem:[%s7 + $0xe8] sm:$0xff]
    %v575 = vld [vmem:[%s7 + $0xf0] sm:$0xff]
    %v576 = vld [vmem:[%s7 + $0xf8] sm:$0xff]
    %v577 = vld [vmem:[%s7 + $0x100] sm:$0xff]
    %v578 = vld [vmem:[%s7 + $0x108] sm:$0xff]
    %v579 = vld [vmem:[%s7 + $0x110] sm:$0xff]
    %v580 = vld [vmem:[%s7 + $0x118] sm:$0xff]
    %v581 = vld [vmem:[%s7 + $0x120] sm:$0xff]
    %v582 = vld [vmem:[%s7 + $0x128] sm:$0xff]
    %v583 = vld [vmem:[%s7 + $0x130] sm:$0xff]
    %v584 = vld [vmem:[%s7 + $0x138] sm:$0xff]
    %v585 = vld [vmem:[%s7 + $0x140] sm:$0xff]
    %v586 = vld [vmem:[%s7 + $0x148] sm:$0xff]
    %v587 = vld [vmem:[%s7 + $0x150] sm:$0xff]
    %v588 = vld [vmem:[%s7 + $0x158] sm:$0xff]
    %v589 = vld [vmem:[%s7 + $0x160] sm:$0xff]
    %v590 = vld [vmem:[%s7 + $0x168] sm:$0xff]
    %v591 = vld [vmem:[%s7 + $0x170] sm:$0xff]
    %v592 = vld [vmem:[%s7 + $0x178] sm:$0xff]
    %v593 = vld [vmem:[%s7 + $0x180] sm:$0xff]
    %v594 = vld [vmem:[%s7 + $0x188] sm:$0xff]
    %v595 = vld [vmem:[%s7 + $0x190] sm:$0xff]
    %v596 = vld [vmem:[%s7 + $0x198] sm:$0xff]
    %v597 = vld [vmem:[%s7 + $0x1a0] sm:$0xff]
    %v598 = vld [vmem:[%s7 + $0x1a8] sm:$0xff]
    %v599 = vld [vmem:[%s7 + $0x1b0] sm:$0xff]
    %v600 = vld [vmem:[%s7 + $0x1b8] sm:$0xff]
    %v601 = vld [vmem:[%s7 + $0x1c0] sm:$0xff]
    %v602 = vld [vmem:[%s7 + $0x1c8] sm:$0xff]
    %v603 = vld [vmem:[%s7 + $0x1d0] sm:$0xff]
    %v604 = vld [vmem:[%s7 + $0x1d8] sm:$0xff]
    %v605 = vld [vmem:[%s7 + $0x1e0] sm:$0xff]
    %v606 = vld [vmem:[%s7 + $0x1e8] sm:$0xff]
    %v607 = vld [vmem:[%s7 + $0x1f0] sm:$0xff]
    %v608 = vld [vmem:[%s7 + $0x1f8] sm:$0xff]
    %v609 = vld [vmem:[%s7 + $0x200] sm:$0xff]
    %v610 = vld [vmem:[%s7 + $0x208] sm:$0xff]
    %v611 = vld [vmem:[%s7 + $0x210] sm:$0xff]
    %v612 = vld [vmem:[%s7 + $0x218] sm:$0xff]
    %v613 = vld [vmem:[%s7 + $0x220] sm:$0xff]
    %v614 = vld [vmem:[%s7 + $0x228] sm:$0xff]
    %v615 = vld [vmem:[%s7 + $0x230] sm:$0xff]
    %v616 = vld [vmem:[%s7 + $0x238] sm:$0xff]
    %v617 = vld [vmem:[%s7 + $0x240] sm:$0xff]
    %v618 = vld [vmem:[%s7 + $0x248] sm:$0xff]
    %v619 = vld [vmem:[%s7 + $0x250] sm:$0xff]
    %v620 = vld [vmem:[%s7 + $0x258] sm:$0xff]
    %v621 = vld [vmem:[%s7 + $0x260] sm:$0xff]
    %v622 = vld [vmem:[%s7 + $0x268] sm:$0xff]
    %v623 = vld [vmem:[%s7 + $0x270] sm:$0xff]
    %v624 = vld [vmem:[%s7 + $0x278] sm:$0xff]
    %v625 = vld [vmem:[%s7 + $0x280] sm:$0xff]
    %v626 = vld [vmem:[%s7 + $0x288] sm:$0xff]
    %v627 = vld [vmem:[%s7 + $0x290] sm:$0xff]
    %v628 = vld [vmem:[%s7 + $0x298] sm:$0xff]
    %v629 = vld [vmem:[%s7 + $0x2a0] sm:$0xff]
    %v630 = vld [vmem:[%s7 + $0x2a8] sm:$0xff]
    %v631 = vld [vmem:[%s7 + $0x2b0] sm:$0xff]
    %v632 = vld [vmem:[%s7 + $0x2b8] sm:$0xff]
    %v633 = vld [vmem:[%s7 + $0x2c0] sm:$0xff]
    %v634 = vld [vmem:[%s7 + $0x2c8] sm:$0xff]
    %v635 = vld [vmem:[%s7 + $0x2d0] sm:$0xff]
    %v636 = vld [vmem:[%s7 + $0x2d8] sm:$0xff]
    %v637 = vld [vmem:[%s7 + $0x2e0] sm:$0xff]
    %v638 = vld [vmem:[%s7 + $0x2e8] sm:$0xff]
    %v639 = vld [vmem:[%s7 + $0x2f0] sm:$0xff]
    %v640 = vld [vmem:[%s7 + $0x2f8] sm:$0xff]
    %v641 = vld [vmem:[%s7 + $0x300] sm:$0xff]
    %v642 = vld [vmem:[%s7 + $0x308] sm:$0xff]
    %v643 = vld [vmem:[%s7 + $0x310] sm:$0xff]
    %v644 = vld [vmem:[%s7 + $0x318] sm:$0xff]
    %v645 = vld [vmem:[%s7 + $0x320] sm:$0xff]
    %v646 = vld [vmem:[%s7 + $0x328] sm:$0xff]
    %v647 = vld [vmem:[%s7 + $0x330] sm:$0xff]
    %v648 = vld [vmem:[%s7 + $0x338] sm:$0xff]
    %v649 = vld [vmem:[%s7 + $0x340] sm:$0xff]
    %v650 = vld [vmem:[%s7 + $0x348] sm:$0xff]
    %v651 = vld [vmem:[%s7 + $0x350] sm:$0xff]
    %v652 = vld [vmem:[%s7 + $0x358] sm:$0xff]
    %v653 = vld [vmem:[%s7 + $0x360] sm:$0xff]
    %v654 = vld [vmem:[%s7 + $0x368] sm:$0xff]
    %v655 = vld [vmem:[%s7 + $0x370] sm:$0xff]
    %v656 = vld [vmem:[%s7 + $0x378] sm:$0xff]
    %v657 = vld [vmem:[%s7 + $0x380] sm:$0xff]
    %v658 = vld [vmem:[%s7 + $0x388] sm:$0xff]
    %v659 = vld [vmem:[%s7 + $0x390] sm:$0xff]
    %v660 = vld [vmem:[%s7 + $0x398] sm:$0xff]
    %v661 = vld [vmem:[%s7 + $0x3a0] sm:$0xff]
    %v662 = vld [vmem:[%s7 + $0x3a8] sm:$0xff]
    %v663 = vld [vmem:[%s7 + $0x3b0] sm:$0xff]
    %v664 = vld [vmem:[%s7 + $0x3b8] sm:$0xff]
    %v665 = vld [vmem:[%s7 + $0x3c0] sm:$0xff]
    %v666 = vld [vmem:[%s7 + $0x3c8] sm:$0xff]
    %v667 = vld [vmem:[%s7 + $0x3d0] sm:$0xff]
    %v668 = vld [vmem:[%s7 + $0x3d8] sm:$0xff]
    %v669 = vld [vmem:[%s7 + $0x3e0] sm:$0xff]
    %v670 = vld [vmem:[%s7 + $0x3e8] sm:$0xff]
    %v671 = vld [vmem:[%s7 + $0x3f0] sm:$0xff]
    %v672 = vld [vmem:[%s7 + $0x3f8] sm:$0xff]
    %673 = vmatprep.subr.mxu0 0.0
    %674 = vmatpush1.msra.mxu0 %v560
    %675 = vmatprep.subr.mxu0 0.0
    %676 = vmatpush1.msra.mxu0 %v559
    %677 = vmatprep.subr.mxu0 0.0
    %678 = vmatpush1.msra.mxu0 %v558
    %679 = vmatprep.subr.mxu0 0.0
    %680 = vmatpush1.msra.mxu0 %v557
    %681 = vmatprep.subr.mxu0 0.0
    %682 = vmatpush1.msra.mxu0 %v556
    %683 = vmatprep.subr.mxu0 0.0
    %684 = vmatpush1.msra.mxu0 %v555
    %685 = vmatprep.subr.mxu0 0.0
    %686 = vmatpush1.msra.mxu0 %v554
    %687 = vmatprep.subr.mxu0 0.0
    %688 = vmatpush1.msra.mxu0 %v553
    %689 = vmatprep.subr.mxu0 0.0
    %690 = vmatpush1.msra.mxu0 %v552
    %691 = vmatprep.subr.mxu0 0.0
    %692 = vmatpush1.msra.mxu0 %v551
    %693 = vmatprep.subr.mxu0 0.0
    %694 = vmatpush1.msra.mxu0 %v550
    %695 = vmatprep.subr.mxu0 0.0
    %696 = vmatpush1.msra.mxu0 %v549
    %697 = vmatprep.subr.mxu0 0.0
    %698 = vmatpush1.msra.mxu0 %v548
    %699 = vmatprep.subr.mxu0 0.0
    %700 = vmatpush1.msra.mxu0 %v547
    %701 = vmatprep.subr.mxu0 0.0
    %702 = vmatpush1.msra.mxu0 %v546
    %703 = vmatprep.subr.mxu0 0.0
    %704 = vmatpush1.msra.mxu0 %v545
    %705 = vmatprep.subr.mxu0 0.0
    %706 = vmatpush2.msra.mxu0 0.0
    %707 = vmatprep.subr.mxu0 0.0
    %708 = vmatpush2.msra.mxu0 0.0
    %709 = vmatprep.subr.mxu0 0.0
    %710 = vmatpush2.msra.mxu0 0.0
    %711 = vmatprep.subr.mxu0 0.0
    %712 = vmatpush2.msra.mxu0 0.0
    %713 = vmatprep.subr.mxu0 0.0
    %714 = vmatpush2.msra.mxu0 0.0
    %715 = vmatprep.subr.mxu0 0.0
    %716 = vmatpush2.msra.mxu0 0.0
    %717 = vmatprep.subr.mxu0 0.0
    %718 = vmatpush2.msra.mxu0 0.0
    %719 = vmatprep.subr.mxu0 0.0
    %720 = vmatpush2.msra.mxu0 0.0
    %721 = vmatprep.subr.mxu0 0.0
    %722 = vmatpush2.msra.mxu0 0.0
    %723 = vmatprep.subr.mxu0 0.0
    %724 = vmatpush2.msra.mxu0 0.0
    %725 = vmatprep.subr.mxu0 0.0
    %726 = vmatpush2.msra.mxu0 0.0
    %727 = vmatprep.subr.mxu0 0.0
    %728 = vmatpush2.msra.mxu0 0.0
    %729 = vmatprep.subr.mxu0 0.0
    %730 = vmatpush2.msra.mxu0 0.0
    %731 = vmatprep.subr.mxu0 0.0
    %732 = vmatpush2.msra.mxu0 0.0
    %733 = vmatprep.subr.mxu0 0.0
    %734 = vmatpush2.msra.mxu0 0.0
    %735 = vmatprep.subr.mxu0 0.0
    %736 = vmatpush2.msra.mxu0 0.0
    %737 = vmatprep.mubr.f32.mxu0 0.0
    %738 = vmatmul.mubr.f32.gmra.mxu0 %v511
    %v739 = vpop.f32.mrf.mxu0
    %v740 = vadd.f32 0.0, %v739
    %v741 = vpop.f32.mrf.mxu0
    %742 = vdwg.mxu0
    %743 = vmatprep.subr.mxu0 0.0
    %744 = vmatpush1.msra.mxu0 %v576
    %745 = vmatprep.subr.mxu0 0.0
    %746 = vmatpush1.msra.mxu0 %v575
    %747 = vmatprep.subr.mxu0 0.0
    %748 = vmatpush1.msra.mxu0 %v574
    %749 = vmatprep.subr.mxu0 0.0
    %750 = vmatpush1.msra.mxu0 %v573
    %751 = vmatprep.subr.mxu0 0.0
    %752 = vmatpush1.msra.mxu0 %v572
    %753 = vmatprep.subr.mxu0 0.0
    %754 = vmatpush1.msra.mxu0 %v571
    %755 = vmatprep.subr.mxu0 0.0
    %756 = vmatpush1.msra.mxu0 %v570
    %757 = vmatprep.subr.mxu0 0.0
    %758 = vmatpush1.msra.mxu0 %v569
    %759 = vmatprep.subr.mxu0 0.0
    %760 = vmatpush1.msra.mxu0 %v568
    %761 = vmatprep.subr.mxu0 0.0
    %762 = vmatpush1.msra.mxu0 %v567
    %763 = vmatprep.subr.mxu0 0.0
    %764 = vmatpush1.msra.mxu0 %v566
    %765 = vmatprep.subr.mxu0 0.0
    %766 = vmatpush1.msra.mxu0 %v565
    %767 = vmatprep.subr.mxu0 0.0
    %768 = vmatpush1.msra.mxu0 %v564
    %769 = vmatprep.subr.mxu0 0.0
    %770 = vmatpush1.msra.mxu0 %v563
    %771 = vmatprep.subr.mxu0 0.0
    %772 = vmatpush1.msra.mxu0 %v562
    %773 = vmatprep.subr.mxu0 0.0
    %774 = vmatpush1.msra.mxu0 %v561
    %775 = vmatprep.subr.mxu0 0.0
    %776 = vmatpush2.msra.mxu0 0.0
    %777 = vmatprep.subr.mxu0 0.0
    %778 = vmatpush2.msra.mxu0 0.0
    %779 = vmatprep.subr.mxu0 0.0
    %780 = vmatpush2.msra.mxu0 0.0
    %781 = vmatprep.subr.mxu0 0.0
    %782 = vmatpush2.msra.mxu0 0.0
    %783 = vmatprep.subr.mxu0 0.0
    %784 = vmatpush2.msra.mxu0 0.0
    %785 = vmatprep.subr.mxu0 0.0
    %786 = vmatpush2.msra.mxu0 0.0
    %787 = vmatprep.subr.mxu0 0.0
    %788 = vmatpush2.msra.mxu0 0.0
    %789 = vmatprep.subr.mxu0 0.0
    %790 = vmatpush2.msra.mxu0 0.0
    %791 = vmatprep.subr.mxu0 0.0
    %792 = vmatpush2.msra.mxu0 0.0
    %793 = vmatprep.subr.mxu0 0.0
    %794 = vmatpush2.msra.mxu0 0.0
    %795 = vmatprep.subr.mxu0 0.0
    %796 = vmatpush2.msra.mxu0 0.0
    %797 = vmatprep.subr.mxu0 0.0
    %798 = vmatpush2.msra.mxu0 0.0
    %799 = vmatprep.subr.mxu0 0.0
    %800 = vmatpush2.msra.mxu0 0.0
    %801 = vmatprep.subr.mxu0 0.0
    %802 = vmatpush2.msra.mxu0 0.0
    %803 = vmatprep.subr.mxu0 0.0
    %804 = vmatpush2.msra.mxu0 0.0
    %805 = vmatprep.subr.mxu0 0.0
    %806 = vmatpush2.msra.mxu0 0.0
    %807 = vmatprep.mubr.f32.mxu0 0.0
    %808 = vmatmul.mubr.f32.gmra.mxu0 %v525
    %v809 = vpop.f32.mrf.mxu0
    %v810 = vadd.f32 0.0, %v809
    %v811 = vpop.f32.mrf.mxu0
    %812 = vdwg.mxu0
    %813 = vmatprep.subr.mxu0 0.0
    %814 = vmatpush1.msra.mxu0 %v592
    %815 = vmatprep.subr.mxu0 0.0
    %816 = vmatpush1.msra.mxu0 %v591
    %817 = vmatprep.subr.mxu0 0.0
    %818 = vmatpush1.msra.mxu0 %v590
    %819 = vmatprep.subr.mxu0 0.0
    %820 = vmatpush1.msra.mxu0 %v589
    %821 = vmatprep.subr.mxu0 0.0
    %822 = vmatpush1.msra.mxu0 %v588
    %823 = vmatprep.subr.mxu0 0.0
    %824 = vmatpush1.msra.mxu0 %v587
    %825 = vmatprep.subr.mxu0 0.0
    %826 = vmatpush1.msra.mxu0 %v586
    %827 = vmatprep.subr.mxu0 0.0
    %828 = vmatpush1.msra.mxu0 %v585
    %829 = vmatprep.subr.mxu0 0.0
    %830 = vmatpush1.msra.mxu0 %v584
    %831 = vmatprep.subr.mxu0 0.0
    %832 = vmatpush1.msra.mxu0 %v583
    %833 = vmatprep.subr.mxu0 0.0
    %834 = vmatpush1.msra.mxu0 %v582
    %835 = vmatprep.subr.mxu0 0.0
    %836 = vmatpush1.msra.mxu0 %v581
    %837 = vmatprep.subr.mxu0 0.0
    %838 = vmatpush1.msra.mxu0 %v580
    %839 = vmatprep.subr.mxu0 0.0
    %840 = vmatpush1.msra.mxu0 %v579
    %841 = vmatprep.subr.mxu0 0.0
    %842 = vmatpush1.msra.mxu0 %v578
    %843 = vmatprep.subr.mxu0 0.0
    %844 = vmatpush1.msra.mxu0 %v577
    %845 = vmatprep.subr.mxu0 0.0
    %846 = vmatpush2.msra.mxu0 0.0
    %847 = vmatprep.subr.mxu0 0.0
    %848 = vmatpush2.msra.mxu0 0.0
    %849 = vmatprep.subr.mxu0 0.0
    %850 = vmatpush2.msra.mxu0 0.0
    %851 = vmatprep.subr.mxu0 0.0
    %852 = vmatpush2.msra.mxu0 0.0
    %853 = vmatprep.subr.mxu0 0.0
    %854 = vmatpush2.msra.mxu0 0.0
    %855 = vmatprep.subr.mxu0 0.0
    %856 = vmatpush2.msra.mxu0 0.0
    %857 = vmatprep.subr.mxu0 0.0
    %858 = vmatpush2.msra.mxu0 0.0
    %859 = vmatprep.subr.mxu0 0.0
    %860 = vmatpush2.msra.mxu0 0.0
    %861 = vmatprep.subr.mxu0 0.0
    %862 = vmatpush2.msra.mxu0 0.0
    %863 = vmatprep.subr.mxu0 0.0
    %864 = vmatpush2.msra.mxu0 0.0
    %865 = vmatprep.subr.mxu0 0.0
    %866 = vmatpush2.msra.mxu0 0.0
    %867 = vmatprep.subr.mxu0 0.0
    %868 = vmatpush2.msra.mxu0 0.0
    %869 = vmatprep.subr.mxu0 0.0
    %870 = vmatpush2.msra.mxu0 0.0
    %871 = vmatprep.subr.mxu0 0.0
    %872 = vmatpush2.msra.mxu0 0.0
    %873 = vmatprep.subr.mxu0 0.0
    %874 = vmatpush2.msra.mxu0 0.0
    %875 = vmatprep.subr.mxu0 0.0
    %876 = vmatpush2.msra.mxu0 0.0
    %877 = vmatprep.mubr.f32.mxu0 0.0
    %878 = vmatmul.mubr.f32.gmra.mxu0 %v533
    %v879 = vpop.f32.mrf.mxu0
    %v880 = vadd.f32 0.0, %v879
    %v881 = vpop.f32.mrf.mxu0
    %882 = vdwg.mxu0
    %883 = vmatprep.subr.mxu0 0.0
    %884 = vmatpush1.msra.mxu0 %v608
    %885 = vmatprep.subr.mxu0 0.0
    %886 = vmatpush1.msra.mxu0 %v607
    %887 = vmatprep.subr.mxu0 0.0
    %888 = vmatpush1.msra.mxu0 %v606
    %889 = vmatprep.subr.mxu0 0.0
    %890 = vmatpush1.msra.mxu0 %v605
    %891 = vmatprep.subr.mxu0 0.0
    %892 = vmatpush1.msra.mxu0 %v604
    %893 = vmatprep.subr.mxu0 0.0
    %894 = vmatpush1.msra.mxu0 %v603
    %895 = vmatprep.subr.mxu0 0.0
    %896 = vmatpush1.msra.mxu0 %v602
    %897 = vmatprep.subr.mxu0 0.0
    %898 = vmatpush1.msra.mxu0 %v601
    %899 = vmatprep.subr.mxu0 0.0
    %900 = vmatpush1.msra.mxu0 %v600
    %901 = vmatprep.subr.mxu0 0.0
    %902 = vmatpush1.msra.mxu0 %v599
    %903 = vmatprep.subr.mxu0 0.0
    %904 = vmatpush1.msra.mxu0 %v598
    %905 = vmatprep.subr.mxu0 0.0
    %906 = vmatpush1.msra.mxu0 %v597
    %907 = vmatprep.subr.mxu0 0.0
    %908 = vmatpush1.msra.mxu0 %v596
    %909 = vmatprep.subr.mxu0 0.0
    %910 = vmatpush1.msra.mxu0 %v595
    %911 = vmatprep.subr.mxu0 0.0
    %912 = vmatpush1.msra.mxu0 %v594
    %913 = vmatprep.subr.mxu0 0.0
    %914 = vmatpush1.msra.mxu0 %v593
    %915 = vmatprep.subr.mxu0 0.0
    %916 = vmatpush2.msra.mxu0 0.0
    %917 = vmatprep.subr.mxu0 0.0
    %918 = vmatpush2.msra.mxu0 0.0
    %919 = vmatprep.subr.mxu0 0.0
    %920 = vmatpush2.msra.mxu0 0.0
    %921 = vmatprep.subr.mxu0 0.0
    %922 = vmatpush2.msra.mxu0 0.0
    %923 = vmatprep.subr.mxu0 0.0
    %924 = vmatpush2.msra.mxu0 0.0
    %925 = vmatprep.subr.mxu0 0.0
    %926 = vmatpush2.msra.mxu0 0.0
    %927 = vmatprep.subr.mxu0 0.0
    %928 = vmatpush2.msra.mxu0 0.0
    %929 = vmatprep.subr.mxu0 0.0
    %930 = vmatpush2.msra.mxu0 0.0
    %931 = vmatprep.subr.mxu0 0.0
    %932 = vmatpush2.msra.mxu0 0.0
    %933 = vmatprep.subr.mxu0 0.0
    %934 = vmatpush2.msra.mxu0 0.0
    %935 = vmatprep.subr.mxu0 0.0
    %936 = vmatpush2.msra.mxu0 0.0
    %937 = vmatprep.subr.mxu0 0.0
    %938 = vmatpush2.msra.mxu0 0.0
    %939 = vmatprep.subr.mxu0 0.0
    %940 = vmatpush2.msra.mxu0 0.0
    %941 = vmatprep.subr.mxu0 0.0
    %942 = vmatpush2.msra.mxu0 0.0
    %943 = vmatprep.subr.mxu0 0.0
    %944 = vmatpush2.msra.mxu0 0.0
    %945 = vmatprep.subr.mxu0 0.0
    %946 = vmatpush2.msra.mxu0 0.0
    %947 = vmatprep.mubr.f32.mxu0 0.0
    %948 = vmatmul.mubr.f32.gmra.mxu0 %v535
    %v949 = vpop.f32.mrf.mxu0
    %v950 = vadd.f32 0.0, %v949
    %v951 = vpop.f32.mrf.mxu0
    %952 = vdwg.mxu0
    %953 = vmatprep.subr.mxu0 0.0
    %954 = vmatpush1.msra.mxu0 %v624
    %955 = vmatprep.subr.mxu0 0.0
    %956 = vmatpush1.msra.mxu0 %v623
    %957 = vmatprep.subr.mxu0 0.0
    %958 = vmatpush1.msra.mxu0 %v622
    %959 = vmatprep.subr.mxu0 0.0
    %960 = vmatpush1.msra.mxu0 %v621
    %961 = vmatprep.subr.mxu0 0.0
    %962 = vmatpush1.msra.mxu0 %v620
    %963 = vmatprep.subr.mxu0 0.0
    %964 = vmatpush1.msra.mxu0 %v619
    %965 = vmatprep.subr.mxu0 0.0
    %966 = vmatpush1.msra.mxu0 %v618
    %967 = vmatprep.subr.mxu0 0.0
    %968 = vmatpush1.msra.mxu0 %v617
    %969 = vmatprep.subr.mxu0 0.0
    %970 = vmatpush1.msra.mxu0 %v616
    %971 = vmatprep.subr.mxu0 0.0
    %972 = vmatpush1.msra.mxu0 %v615
    %973 = vmatprep.subr.mxu0 0.0
    %974 = vmatpush1.msra.mxu0 %v614
    %975 = vmatprep.subr.mxu0 0.0
    %976 = vmatpush1.msra.mxu0 %v613
    %977 = vmatprep.subr.mxu0 0.0
    %978 = vmatpush1.msra.mxu0 %v612
    %979 = vmatprep.subr.mxu0 0.0
    %980 = vmatpush1.msra.mxu0 %v611
    %981 = vmatprep.subr.mxu0 0.0
    %982 = vmatpush1.msra.mxu0 %v610
    %983 = vmatprep.subr.mxu0 0.0
    %984 = vmatpush1.msra.mxu0 %v609
    %985 = vmatprep.subr.mxu0 0.0
    %986 = vmatpush2.msra.mxu0 0.0
    %987 = vmatprep.subr.mxu0 0.0
    %988 = vmatpush2.msra.mxu0 0.0
    %989 = vmatprep.subr.mxu0 0.0
    %990 = vmatpush2.msra.mxu0 0.0
    %991 = vmatprep.subr.mxu0 0.0
    %992 = vmatpush2.msra.mxu0 0.0
    %993 = vmatprep.subr.mxu0 0.0
    %994 = vmatpush2.msra.mxu0 0.0
    %995 = vmatprep.subr.mxu0 0.0
    %996 = vmatpush2.msra.mxu0 0.0
    %997 = vmatprep.subr.mxu0 0.0
    %998 = vmatpush2.msra.mxu0 0.0
    %999 = vmatprep.subr.mxu0 0.0
    %1000 = vmatpush2.msra.mxu0 0.0
    %1001 = vmatprep.subr.mxu0 0.0
    %1002 = vmatpush2.msra.mxu0 0.0
    %1003 = vmatprep.subr.mxu0 0.0
    %1004 = vmatpush2.msra.mxu0 0.0
    %1005 = vmatprep.subr.mxu0 0.0
    %1006 = vmatpush2.msra.mxu0 0.0
    %1007 = vmatprep.subr.mxu0 0.0
    %1008 = vmatpush2.msra.mxu0 0.0
    %1009 = vmatprep.subr.mxu0 0.0
    %1010 = vmatpush2.msra.mxu0 0.0
    %1011 = vmatprep.subr.mxu0 0.0
    %1012 = vmatpush2.msra.mxu0 0.0
    %1013 = vmatprep.subr.mxu0 0.0
    %1014 = vmatpush2.msra.mxu0 0.0
    %1015 = vmatprep.subr.mxu0 0.0
    %1016 = vmatpush2.msra.mxu0 0.0
    %1017 = vmatprep.mubr.f32.mxu0 0.0
    %1018 = vmatmul.mubr.f32.gmra.mxu0 %v518
    %v1019 = vpop.f32.mrf.mxu0
    %v1020 = vadd.f32 0.0, %v1019
    %v1021 = vpop.f32.mrf.mxu0
    %1022 = vdwg.mxu0
    %1023 = vmatprep.subr.mxu0 0.0
    %1024 = vmatpush1.msra.mxu0 %v640
    %1025 = vmatprep.subr.mxu0 0.0
    %1026 = vmatpush1.msra.mxu0 %v639
    %1027 = vmatprep.subr.mxu0 0.0
    %1028 = vmatpush1.msra.mxu0 %v638
    %1029 = vmatprep.subr.mxu0 0.0
    %1030 = vmatpush1.msra.mxu0 %v637
    %1031 = vmatprep.subr.mxu0 0.0
    %1032 = vmatpush1.msra.mxu0 %v636
    %1033 = vmatprep.subr.mxu0 0.0
    %1034 = vmatpush1.msra.mxu0 %v635
    %1035 = vmatprep.subr.mxu0 0.0
    %1036 = vmatpush1.msra.mxu0 %v634
    %1037 = vmatprep.subr.mxu0 0.0
    %1038 = vmatpush1.msra.mxu0 %v633
    %1039 = vmatprep.subr.mxu0 0.0
    %1040 = vmatpush1.msra.mxu0 %v632
    %1041 = vmatprep.subr.mxu0 0.0
    %1042 = vmatpush1.msra.mxu0 %v631
    %1043 = vmatprep.subr.mxu0 0.0
    %1044 = vmatpush1.msra.mxu0 %v630
    %1045 = vmatprep.subr.mxu0 0.0
    %1046 = vmatpush1.msra.mxu0 %v629
    %1047 = vmatprep.subr.mxu0 0.0
    %1048 = vmatpush1.msra.mxu0 %v628
    %1049 = vmatprep.subr.mxu0 0.0
    %1050 = vmatpush1.msra.mxu0 %v627
    %1051 = vmatprep.subr.mxu0 0.0
    %1052 = vmatpush1.msra.mxu0 %v626
    %1053 = vmatprep.subr.mxu0 0.0
    %1054 = vmatpush1.msra.mxu0 %v625
    %1055 = vmatprep.subr.mxu0 0.0
    %1056 = vmatpush2.msra.mxu0 0.0
    %1057 = vmatprep.subr.mxu0 0.0
    %1058 = vmatpush2.msra.mxu0 0.0
    %1059 = vmatprep.subr.mxu0 0.0
    %1060 = vmatpush2.msra.mxu0 0.0
    %1061 = vmatprep.subr.mxu0 0.0
    %1062 = vmatpush2.msra.mxu0 0.0
    %1063 = vmatprep.subr.mxu0 0.0
    %1064 = vmatpush2.msra.mxu0 0.0
    %1065 = vmatprep.subr.mxu0 0.0
    %1066 = vmatpush2.msra.mxu0 0.0
    %1067 = vmatprep.subr.mxu0 0.0
    %1068 = vmatpush2.msra.mxu0 0.0
    %1069 = vmatprep.subr.mxu0 0.0
    %1070 = vmatpush2.msra.mxu0 0.0
    %1071 = vmatprep.subr.mxu0 0.0
    %1072 = vmatpush2.msra.mxu0 0.0
    %1073 = vmatprep.subr.mxu0 0.0
    %1074 = vmatpush2.msra.mxu0 0.0
    %1075 = vmatprep.subr.mxu0 0.0
    %1076 = vmatpush2.msra.mxu0 0.0
    %1077 = vmatprep.subr.mxu0 0.0
    %1078 = vmatpush2.msra.mxu0 0.0
    %1079 = vmatprep.subr.mxu0 0.0
    %1080 = vmatpush2.msra.mxu0 0.0
    %1081 = vmatprep.subr.mxu0 0.0
    %1082 = vmatpush2.msra.mxu0 0.0
    %1083 = vmatprep.subr.mxu0 0.0
    %1084 = vmatpush2.msra.mxu0 0.0
    %1085 = vmatprep.subr.mxu0 0.0
    %1086 = vmatpush2.msra.mxu0 0.0
    %1087 = vmatprep.mubr.f32.mxu0 0.0
    %1088 = vmatmul.mubr.f32.gmra.mxu0 %v532
    %v1089 = vpop.f32.mrf.mxu0
    %v1090 = vadd.f32 0.0, %v1089
    %v1091 = vpop.f32.mrf.mxu0
    %1092 = vdwg.mxu0
    %1093 = vmatprep.subr.mxu0 0.0
    %1094 = vmatpush1.msra.mxu0 %v656
    %1095 = vmatprep.subr.mxu0 0.0
    %1096 = vmatpush1.msra.mxu0 %v655
    %1097 = vmatprep.subr.mxu0 0.0
    %1098 = vmatpush1.msra.mxu0 %v654
    %1099 = vmatprep.subr.mxu0 0.0
    %1100 = vmatpush1.msra.mxu0 %v653
    %1101 = vmatprep.subr.mxu0 0.0
    %1102 = vmatpush1.msra.mxu0 %v652
    %1103 = vmatprep.subr.mxu0 0.0
    %1104 = vmatpush1.msra.mxu0 %v651
    %1105 = vmatprep.subr.mxu0 0.0
    %1106 = vmatpush1.msra.mxu0 %v650
    %1107 = vmatprep.subr.mxu0 0.0
    %1108 = vmatpush1.msra.mxu0 %v649
    %1109 = vmatprep.subr.mxu0 0.0
    %1110 = vmatpush1.msra.mxu0 %v648
    %1111 = vmatprep.subr.mxu0 0.0
    %1112 = vmatpush1.msra.mxu0 %v647
    %1113 = vmatprep.subr.mxu0 0.0
    %1114 = vmatpush1.msra.mxu0 %v646
    %1115 = vmatprep.subr.mxu0 0.0
    %1116 = vmatpush1.msra.mxu0 %v645
    %1117 = vmatprep.subr.mxu0 0.0
    %1118 = vmatpush1.msra.mxu0 %v644
    %1119 = vmatprep.subr.mxu0 0.0
    %1120 = vmatpush1.msra.mxu0 %v643
    %1121 = vmatprep.subr.mxu0 0.0
    %1122 = vmatpush1.msra.mxu0 %v642
    %1123 = vmatprep.subr.mxu0 0.0
    %1124 = vmatpush1.msra.mxu0 %v641
    %1125 = vmatprep.subr.mxu0 0.0
    %1126 = vmatpush2.msra.mxu0 0.0
    %1127 = vmatprep.subr.mxu0 0.0
    %1128 = vmatpush2.msra.mxu0 0.0
    %1129 = vmatprep.subr.mxu0 0.0
    %1130 = vmatpush2.msra.mxu0 0.0
    %1131 = vmatprep.subr.mxu0 0.0
    %1132 = vmatpush2.msra.mxu0 0.0
    %1133 = vmatprep.subr.mxu0 0.0
    %1134 = vmatpush2.msra.mxu0 0.0
    %1135 = vmatprep.subr.mxu0 0.0
    %1136 = vmatpush2.msra.mxu0 0.0
    %1137 = vmatprep.subr.mxu0 0.0
    %1138 = vmatpush2.msra.mxu0 0.0
    %1139 = vmatprep.subr.mxu0 0.0
    %1140 = vmatpush2.msra.mxu0 0.0
    %1141 = vmatprep.subr.mxu0 0.0
    %1142 = vmatpush2.msra.mxu0 0.0
    %1143 = vmatprep.subr.mxu0 0.0
    %1144 = vmatpush2.msra.mxu0 0.0
    %1145 = vmatprep.subr.mxu0 0.0
    %1146 = vmatpush2.msra.mxu0 0.0
    %1147 = vmatprep.subr.mxu0 0.0
    %1148 = vmatpush2.msra.mxu0 0.0
    %1149 = vmatprep.subr.mxu0 0.0
    %1150 = vmatpush2.msra.mxu0 0.0
    %1151 = vmatprep.subr.mxu0 0.0
    %1152 = vmatpush2.msra.mxu0 0.0
    %1153 = vmatprep.subr.mxu0 0.0
    %1154 = vmatpush2.msra.mxu0 0.0
    %1155 = vmatprep.subr.mxu0 0.0
    %1156 = vmatpush2.msra.mxu0 0.0
    %1157 = vmatprep.mubr.f32.mxu0 0.0
    %1158 = vmatmul.mubr.f32.gmra.mxu0 %v534
    %v1159 = vpop.f32.mrf.mxu0
    %v1160 = vadd.f32 0.0, %v1159
    %v1161 = vpop.f32.mrf.mxu0
    %1162 = vdwg.mxu0
    %1163 = vmatprep.subr.mxu0 0.0
    %1164 = vmatpush1.msra.mxu0 %v672
    %1165 = vmatprep.subr.mxu0 0.0
    %1166 = vmatpush1.msra.mxu0 %v671
    %1167 = vmatprep.subr.mxu0 0.0
    %1168 = vmatpush1.msra.mxu0 %v670
    %1169 = vmatprep.subr.mxu0 0.0
    %1170 = vmatpush1.msra.mxu0 %v669
    %1171 = vmatprep.subr.mxu0 0.0
    %1172 = vmatpush1.msra.mxu0 %v668
    %1173 = vmatprep.subr.mxu0 0.0
    %1174 = vmatpush1.msra.mxu0 %v667
    %1175 = vmatprep.subr.mxu0 0.0
    %1176 = vmatpush1.msra.mxu0 %v666
    %1177 = vmatprep.subr.mxu0 0.0
    %1178 = vmatpush1.msra.mxu0 %v665
    %1179 = vmatprep.subr.mxu0 0.0
    %1180 = vmatpush1.msra.mxu0 %v664
    %1181 = vmatprep.subr.mxu0 0.0
    %1182 = vmatpush1.msra.mxu0 %v663
    %1183 = vmatprep.subr.mxu0 0.0
    %1184 = vmatpush1.msra.mxu0 %v662
    %1185 = vmatprep.subr.mxu0 0.0
    %1186 = vmatpush1.msra.mxu0 %v661
    %1187 = vmatprep.subr.mxu0 0.0
    %1188 = vmatpush1.msra.mxu0 %v660
    %1189 = vmatprep.subr.mxu0 0.0
    %1190 = vmatpush1.msra.mxu0 %v659
    %1191 = vmatprep.subr.mxu0 0.0
    %1192 = vmatpush1.msra.mxu0 %v658
    %1193 = vmatprep.subr.mxu0 0.0
    %1194 = vmatpush1.msra.mxu0 %v657
    %1195 = vmatprep.subr.mxu0 0.0
    %1196 = vmatpush2.msra.mxu0 0.0
    %1197 = vmatprep.subr.mxu0 0.0
    %1198 = vmatpush2.msra.mxu0 0.0
    %1199 = vmatprep.subr.mxu0 0.0
    %1200 = vmatpush2.msra.mxu0 0.0
    %1201 = vmatprep.subr.mxu0 0.0
    %1202 = vmatpush2.msra.mxu0 0.0
    %1203 = vmatprep.subr.mxu0 0.0
    %1204 = vmatpush2.msra.mxu0 0.0
    %1205 = vmatprep.subr.mxu0 0.0
    %1206 = vmatpush2.msra.mxu0 0.0
    %1207 = vmatprep.subr.mxu0 0.0
    %1208 = vmatpush2.msra.mxu0 0.0
    %1209 = vmatprep.subr.mxu0 0.0
    %1210 = vmatpush2.msra.mxu0 0.0
    %1211 = vmatprep.subr.mxu0 0.0
    %1212 = vmatpush2.msra.mxu0 0.0
    %1213 = vmatprep.subr.mxu0 0.0
    %1214 = vmatpush2.msra.mxu0 0.0
    %1215 = vmatprep.subr.mxu0 0.0
    %1216 = vmatpush2.msra.mxu0 0.0
    %1217 = vmatprep.subr.mxu0 0.0
    %1218 = vmatpush2.msra.mxu0 0.0
    %1219 = vmatprep.subr.mxu0 0.0
    %1220 = vmatpush2.msra.mxu0 0.0
    %1221 = vmatprep.subr.mxu0 0.0
    %1222 = vmatpush2.msra.mxu0 0.0
    %1223 = vmatprep.subr.mxu0 0.0
    %1224 = vmatpush2.msra.mxu0 0.0
    %1225 = vmatprep.subr.mxu0 0.0
    %1226 = vmatpush2.msra.mxu0 0.0
    %1227 = vmatprep.mubr.f32.mxu0 0.0
    %1228 = vmatmul.mubr.f32.gmra.mxu0 %v536
    %v1229 = vpop.f32.mrf.mxu0
    %v1230 = vadd.f32 0.0, %v1229
    %v1231 = vpop.f32.mrf.mxu0
    %1232 = vdwg.mxu0
    %vm1233 = vcmask 57344
    %v1234 = vsel %vm1233, %v740, -inf
    %1235 = vmax.xlane.f32.xlu0 %v1234
    %v1236 = vpop.xlane.xlu0 %1235
    %v1237 = vsel %vm1233, %v810, -inf
    %1238 = vmax.xlane.f32.xlu0 %v1237
    %v1239 = vpop.xlane.xlu0 %1238
    %v1240 = vsel %vm1233, %v880, -inf
    %1241 = vmax.xlane.f32.xlu0 %v1240
    %v1242 = vpop.xlane.xlu0 %1241
    %v1243 = vsel %vm1233, %v950, -inf
    %1244 = vmax.xlane.f32.xlu0 %v1243
    %v1245 = vpop.xlane.xlu0 %1244
    %v1246 = vsel %vm1233, %v1020, -inf
    %1247 = vmax.xlane.f32.xlu0 %v1246
    %v1248 = vpop.xlane.xlu0 %1247
    %v1249 = vsel %vm1233, %v1090, -inf
    %1250 = vmax.xlane.f32.xlu0 %v1249
    %v1251 = vpop.xlane.xlu0 %1250
    %v1252 = vsel %vm1233, %v1160, -inf
    %1253 = vmax.xlane.f32.xlu0 %v1252
    %v1254 = vpop.xlane.xlu0 %1253
    %v1255 = vsel %vm1233, %v1230, -inf
    %1256 = vmax.xlane.f32.xlu0 %v1255
    %v1257 = vpop.xlane.xlu0 %1256
    %v1258 = vsub.f32 %v740, %v1236
    %v1259 = vsub.f32 %v810, %v1239
    %v1260 = vsub.f32 %v880, %v1242
    %v1261 = vsub.f32 %v950, %v1245
    %v1262 = vsub.f32 %v1020, %v1248
    %v1263 = vsub.f32 %v1090, %v1251
    %v1264 = vsub.f32 %v1160, %v1254
    %v1265 = vsub.f32 %v1230, %v1257
    %v1266 = vmul.f32 %v1258, 1.442695
    %v1267 = vpow.pop %v1266
    %v1268 = vmul.f32 %v1259, 1.442695
    %v1269 = vpow.pop %v1268
    %v1270 = vmul.f32 %v1260, 1.442695
    %v1271 = vpow.pop %v1270
    %v1272 = vmul.f32 %v1261, 1.442695
    %v1273 = vpow.pop %v1272
    %v1274 = vmul.f32 %v1262, 1.442695
    %v1275 = vpow.pop %v1274
    %v1276 = vmul.f32 %v1263, 1.442695
    %v1277 = vpow.pop %v1276
    %v1278 = vmul.f32 %v1264, 1.442695
    %v1279 = vpow.pop %v1278
    %v1280 = vmul.f32 %v1265, 1.442695
    %v1281 = vpow.pop %v1280
    %v1282 = vsel %vm1233, %v1267, 0.0
    %1283 = vadd.xlane.f32.xlu0 %v1282
    %v1284 = vpop.xlane.xlu0 %1283
    %v1285 = vsel %vm1233, %v1269, 0.0
    %1286 = vadd.xlane.f32.xlu0 %v1285
    %v1287 = vpop.xlane.xlu0 %1286
    %v1288 = vsel %vm1233, %v1271, 0.0
    %1289 = vadd.xlane.f32.xlu0 %v1288
    %v1290 = vpop.xlane.xlu0 %1289
    %v1291 = vsel %vm1233, %v1273, 0.0
    %1292 = vadd.xlane.f32.xlu0 %v1291
    %v1293 = vpop.xlane.xlu0 %1292
    %v1294 = vsel %vm1233, %v1275, 0.0
    %1295 = vadd.xlane.f32.xlu0 %v1294
    %v1296 = vpop.xlane.xlu0 %1295
    %v1297 = vsel %vm1233, %v1277, 0.0
    %1298 = vadd.xlane.f32.xlu0 %v1297
    %v1299 = vpop.xlane.xlu0 %1298
    %v1300 = vsel %vm1233, %v1279, 0.0
    %1301 = vadd.xlane.f32.xlu0 %v1300
    %v1302 = vpop.xlane.xlu0 %1301
    %v1303 = vsel %vm1233, %v1281, 0.0
    %1304 = vadd.xlane.f32.xlu0 %v1303
    %v1305 = vpop.xlane.xlu0 %1304
    %v1306 = vrcp.pop %v1284
    %v1307 = vrcp.pop %v1287
    %v1308 = vrcp.pop %v1290
    %v1309 = vrcp.pop %v1293
    %v1310 = vrcp.pop %v1296
    %v1311 = vrcp.pop %v1299
    %v1312 = vrcp.pop %v1302
    %v1313 = vrcp.pop %v1305
    %v1314 = vmul.f32 %v1267, %v1306
    %v1315 = vmul.f32 %v1269, %v1307
    %v1316 = vmul.f32 %v1271, %v1308
    %v1317 = vmul.f32 %v1273, %v1309
    %v1318 = vmul.f32 %v1275, %v1310
    %v1319 = vmul.f32 %v1277, %v1311
    %v1320 = vmul.f32 %v1279, %v1312
    %v1321 = vmul.f32 %v1281, %v1313
    %v1322 = vld [vmem:[%s6] sm:$0xff]
    %v1323 = vld [vmem:[%s6 + $0x8] sm:$0xff]
    %v1324 = vld [vmem:[%s6 + $0x10] sm:$0xff]
    %v1325 = vld [vmem:[%s6 + $0x18] sm:$0xff]
    %v1326 = vld [vmem:[%s6 + $0x20] sm:$0xff]
    %v1327 = vld [vmem:[%s6 + $0x28] sm:$0xff]
    %v1328 = vld [vmem:[%s6 + $0x30] sm:$0xff]
    %v1329 = vld [vmem:[%s6 + $0x38] sm:$0xff]
    %vm1330 = vcmask 64512
    %v1332 = vsel %vm1330, %v1314, 0
    %1334 = vmatprep.subr.mxu0 0.0
    %1335 = vmatpush1.msra.mxu0 0.0
    %1336 = vmatprep.subr.mxu0 0.0
    %1337 = vmatpush1.msra.mxu0 0.0
    %1338 = vmatprep.subr.mxu0 0.0
    %1339 = vmatpush1.msra.mxu0 0.0
    %1340 = vmatprep.subr.mxu0 0.0
    %1341 = vmatpush1.msra.mxu0 0.0
    %1342 = vmatprep.subr.mxu0 0.0
    %1343 = vmatpush1.msra.mxu0 0.0
    %1344 = vmatprep.subr.mxu0 0.0
    %1345 = vmatpush1.msra.mxu0 0.0
    %1346 = vmatprep.subr.mxu0 0.0
    %1347 = vmatpush1.msra.mxu0 0.0
    %1348 = vmatprep.subr.mxu0 0.0
    %1349 = vmatpush1.msra.mxu0 0.0
    %1350 = vmatprep.subr.mxu0 0.0
    %1351 = vmatpush1.msra.mxu0 0.0
    %1352 = vmatprep.subr.mxu0 0.0
    %1353 = vmatpush1.msra.mxu0 0.0
    %1354 = vmatprep.subr.mxu0 0.0
    %1355 = vmatpush1.msra.mxu0 0.0
    %1356 = vmatprep.subr.mxu0 0.0
    %1357 = vmatpush1.msra.mxu0 0.0
    %1358 = vmatprep.subr.mxu0 0.0
    %1359 = vmatpush1.msra.mxu0 0.0
    %1360 = vmatprep.subr.mxu0 0.0
    %1361 = vmatpush1.msra.mxu0 0.0
    %1362 = vmatprep.subr.mxu0 0.0
    %1363 = vmatpush1.msra.mxu0 0.0
    %1364 = vmatprep.subr.mxu0 0.0
    %1365 = vmatpush1.msra.mxu0 %v1322
    %1366 = vmatprep.subr.mxu0 0.0
    %1367 = vmatpush2.msra.mxu0 0.0
    %1368 = vmatprep.subr.mxu0 0.0
    %1369 = vmatpush2.msra.mxu0 0.0
    %1370 = vmatprep.subr.mxu0 0.0
    %1371 = vmatpush2.msra.mxu0 0.0
    %1372 = vmatprep.subr.mxu0 0.0
    %1373 = vmatpush2.msra.mxu0 0.0
    %1374 = vmatprep.subr.mxu0 0.0
    %1375 = vmatpush2.msra.mxu0 0.0
    %1376 = vmatprep.subr.mxu0 0.0
    %1377 = vmatpush2.msra.mxu0 0.0
    %1378 = vmatprep.subr.mxu0 0.0
    %1379 = vmatpush2.msra.mxu0 0.0
    %1380 = vmatprep.subr.mxu0 0.0
    %1381 = vmatpush2.msra.mxu0 0.0
    %1382 = vmatprep.subr.mxu0 0.0
    %1383 = vmatpush2.msra.mxu0 0.0
    %1384 = vmatprep.subr.mxu0 0.0
    %1385 = vmatpush2.msra.mxu0 0.0
    %1386 = vmatprep.subr.mxu0 0.0
    %1387 = vmatpush2.msra.mxu0 0.0
    %1388 = vmatprep.subr.mxu0 0.0
    %1389 = vmatpush2.msra.mxu0 0.0
    %1390 = vmatprep.subr.mxu0 0.0
    %1391 = vmatpush2.msra.mxu0 0.0
    %1392 = vmatprep.subr.mxu0 0.0
    %1393 = vmatpush2.msra.mxu0 0.0
    %1394 = vmatprep.subr.mxu0 0.0
    %1395 = vmatpush2.msra.mxu0 0.0
    %1396 = vmatprep.subr.mxu0 0.0
    %1397 = vmatpush2.msra.mxu0 0.0
    %1398 = vmatprep.mubr.f32.mxu0 0.0
    %1399 = vmatmul.mubr.f32.gmra.mxu0 %v1332
    %v1400 = vpop.f32.mrf.mxu0
    %v1401 = vadd.f32 0.0, %v1400
    %v1402 = vpop.f32.mrf.mxu0
    %1403 = vdwg.mxu0
    %v1405 = vsel %vm1330, %v1315, 0
    %1407 = vmatprep.subr.mxu0 0.0
    %1408 = vmatpush1.msra.mxu0 0.0
    %1409 = vmatprep.subr.mxu0 0.0
    %1410 = vmatpush1.msra.mxu0 0.0
    %1411 = vmatprep.subr.mxu0 0.0
    %1412 = vmatpush1.msra.mxu0 0.0
    %1413 = vmatprep.subr.mxu0 0.0
    %1414 = vmatpush1.msra.mxu0 0.0
    %1415 = vmatprep.subr.mxu0 0.0
    %1416 = vmatpush1.msra.mxu0 0.0
    %1417 = vmatprep.subr.mxu0 0.0
    %1418 = vmatpush1.msra.mxu0 0.0
    %1419 = vmatprep.subr.mxu0 0.0
    %1420 = vmatpush1.msra.mxu0 0.0
    %1421 = vmatprep.subr.mxu0 0.0
    %1422 = vmatpush1.msra.mxu0 0.0
    %1423 = vmatprep.subr.mxu0 0.0
    %1424 = vmatpush1.msra.mxu0 0.0
    %1425 = vmatprep.subr.mxu0 0.0
    %1426 = vmatpush1.msra.mxu0 0.0
    %1427 = vmatprep.subr.mxu0 0.0
    %1428 = vmatpush1.msra.mxu0 0.0
    %1429 = vmatprep.subr.mxu0 0.0
    %1430 = vmatpush1.msra.mxu0 0.0
    %1431 = vmatprep.subr.mxu0 0.0
    %1432 = vmatpush1.msra.mxu0 0.0
    %1433 = vmatprep.subr.mxu0 0.0
    %1434 = vmatpush1.msra.mxu0 0.0
    %1435 = vmatprep.subr.mxu0 0.0
    %1436 = vmatpush1.msra.mxu0 0.0
    %1437 = vmatprep.subr.mxu0 0.0
    %1438 = vmatpush1.msra.mxu0 %v1323
    %1439 = vmatprep.subr.mxu0 0.0
    %1440 = vmatpush2.msra.mxu0 0.0
    %1441 = vmatprep.subr.mxu0 0.0
    %1442 = vmatpush2.msra.mxu0 0.0
    %1443 = vmatprep.subr.mxu0 0.0
    %1444 = vmatpush2.msra.mxu0 0.0
    %1445 = vmatprep.subr.mxu0 0.0
    %1446 = vmatpush2.msra.mxu0 0.0
    %1447 = vmatprep.subr.mxu0 0.0
    %1448 = vmatpush2.msra.mxu0 0.0
    %1449 = vmatprep.subr.mxu0 0.0
    %1450 = vmatpush2.msra.mxu0 0.0
    %1451 = vmatprep.subr.mxu0 0.0
    %1452 = vmatpush2.msra.mxu0 0.0
    %1453 = vmatprep.subr.mxu0 0.0
    %1454 = vmatpush2.msra.mxu0 0.0
    %1455 = vmatprep.subr.mxu0 0.0
    %1456 = vmatpush2.msra.mxu0 0.0
    %1457 = vmatprep.subr.mxu0 0.0
    %1458 = vmatpush2.msra.mxu0 0.0
    %1459 = vmatprep.subr.mxu0 0.0
    %1460 = vmatpush2.msra.mxu0 0.0
    %1461 = vmatprep.subr.mxu0 0.0
    %1462 = vmatpush2.msra.mxu0 0.0
    %1463 = vmatprep.subr.mxu0 0.0
    %1464 = vmatpush2.msra.mxu0 0.0
    %1465 = vmatprep.subr.mxu0 0.0
    %1466 = vmatpush2.msra.mxu0 0.0
    %1467 = vmatprep.subr.mxu0 0.0
    %1468 = vmatpush2.msra.mxu0 0.0
    %1469 = vmatprep.subr.mxu0 0.0
    %1470 = vmatpush2.msra.mxu0 0.0
    %1471 = vmatprep.mubr.f32.mxu0 0.0
    %1472 = vmatmul.mubr.f32.gmra.mxu0 %v1405
    %v1473 = vpop.f32.mrf.mxu0
    %v1474 = vadd.f32 0.0, %v1473
    %v1475 = vpop.f32.mrf.mxu0
    %1476 = vdwg.mxu0
    %v1478 = vsel %vm1330, %v1316, 0
    %1480 = vmatprep.subr.mxu0 0.0
    %1481 = vmatpush1.msra.mxu0 0.0
    %1482 = vmatprep.subr.mxu0 0.0
    %1483 = vmatpush1.msra.mxu0 0.0
    %1484 = vmatprep.subr.mxu0 0.0
    %1485 = vmatpush1.msra.mxu0 0.0
    %1486 = vmatprep.subr.mxu0 0.0
    %1487 = vmatpush1.msra.mxu0 0.0
    %1488 = vmatprep.subr.mxu0 0.0
    %1489 = vmatpush1.msra.mxu0 0.0
    %1490 = vmatprep.subr.mxu0 0.0
    %1491 = vmatpush1.msra.mxu0 0.0
    %1492 = vmatprep.subr.mxu0 0.0
    %1493 = vmatpush1.msra.mxu0 0.0
    %1494 = vmatprep.subr.mxu0 0.0
    %1495 = vmatpush1.msra.mxu0 0.0
    %1496 = vmatprep.subr.mxu0 0.0
    %1497 = vmatpush1.msra.mxu0 0.0
    %1498 = vmatprep.subr.mxu0 0.0
    %1499 = vmatpush1.msra.mxu0 0.0
    %1500 = vmatprep.subr.mxu0 0.0
    %1501 = vmatpush1.msra.mxu0 0.0
    %1502 = vmatprep.subr.mxu0 0.0
    %1503 = vmatpush1.msra.mxu0 0.0
    %1504 = vmatprep.subr.mxu0 0.0
    %1505 = vmatpush1.msra.mxu0 0.0
    %1506 = vmatprep.subr.mxu0 0.0
    %1507 = vmatpush1.msra.mxu0 0.0
    %1508 = vmatprep.subr.mxu0 0.0
    %1509 = vmatpush1.msra.mxu0 0.0
    %1510 = vmatprep.subr.mxu0 0.0
    %1511 = vmatpush1.msra.mxu0 %v1324
    %1512 = vmatprep.subr.mxu0 0.0
    %1513 = vmatpush2.msra.mxu0 0.0
    %1514 = vmatprep.subr.mxu0 0.0
    %1515 = vmatpush2.msra.mxu0 0.0
    %1516 = vmatprep.subr.mxu0 0.0
    %1517 = vmatpush2.msra.mxu0 0.0
    %1518 = vmatprep.subr.mxu0 0.0
    %1519 = vmatpush2.msra.mxu0 0.0
    %1520 = vmatprep.subr.mxu0 0.0
    %1521 = vmatpush2.msra.mxu0 0.0
    %1522 = vmatprep.subr.mxu0 0.0
    %1523 = vmatpush2.msra.mxu0 0.0
    %1524 = vmatprep.subr.mxu0 0.0
    %1525 = vmatpush2.msra.mxu0 0.0
    %1526 = vmatprep.subr.mxu0 0.0
    %1527 = vmatpush2.msra.mxu0 0.0
    %1528 = vmatprep.subr.mxu0 0.0
    %1529 = vmatpush2.msra.mxu0 0.0
    %1530 = vmatprep.subr.mxu0 0.0
    %1531 = vmatpush2.msra.mxu0 0.0
    %1532 = vmatprep.subr.mxu0 0.0
    %1533 = vmatpush2.msra.mxu0 0.0
    %1534 = vmatprep.subr.mxu0 0.0
    %1535 = vmatpush2.msra.mxu0 0.0
    %1536 = vmatprep.subr.mxu0 0.0
    %1537 = vmatpush2.msra.mxu0 0.0
    %1538 = vmatprep.subr.mxu0 0.0
    %1539 = vmatpush2.msra.mxu0 0.0
    %1540 = vmatprep.subr.mxu0 0.0
    %1541 = vmatpush2.msra.mxu0 0.0
    %1542 = vmatprep.subr.mxu0 0.0
    %1543 = vmatpush2.msra.mxu0 0.0
    %1544 = vmatprep.mubr.f32.mxu0 0.0
    %1545 = vmatmul.mubr.f32.gmra.mxu0 %v1478
    %v1546 = vpop.f32.mrf.mxu0
    %v1547 = vadd.f32 0.0, %v1546
    %v1548 = vpop.f32.mrf.mxu0
    %1549 = vdwg.mxu0
    %v1551 = vsel %vm1330, %v1317, 0
    %1553 = vmatprep.subr.mxu0 0.0
    %1554 = vmatpush1.msra.mxu0 0.0
    %1555 = vmatprep.subr.mxu0 0.0
    %1556 = vmatpush1.msra.mxu0 0.0
    %1557 = vmatprep.subr.mxu0 0.0
    %1558 = vmatpush1.msra.mxu0 0.0
    %1559 = vmatprep.subr.mxu0 0.0
    %1560 = vmatpush1.msra.mxu0 0.0
    %1561 = vmatprep.subr.mxu0 0.0
    %1562 = vmatpush1.msra.mxu0 0.0
    %1563 = vmatprep.subr.mxu0 0.0
    %1564 = vmatpush1.msra.mxu0 0.0
    %1565 = vmatprep.subr.mxu0 0.0
    %1566 = vmatpush1.msra.mxu0 0.0
    %1567 = vmatprep.subr.mxu0 0.0
    %1568 = vmatpush1.msra.mxu0 0.0
    %1569 = vmatprep.subr.mxu0 0.0
    %1570 = vmatpush1.msra.mxu0 0.0
    %1571 = vmatprep.subr.mxu0 0.0
    %1572 = vmatpush1.msra.mxu0 0.0
    %1573 = vmatprep.subr.mxu0 0.0
    %1574 = vmatpush1.msra.mxu0 0.0
    %1575 = vmatprep.subr.mxu0 0.0
    %1576 = vmatpush1.msra.mxu0 0.0
    %1577 = vmatprep.subr.mxu0 0.0
    %1578 = vmatpush1.msra.mxu0 0.0
    %1579 = vmatprep.subr.mxu0 0.0
    %1580 = vmatpush1.msra.mxu0 0.0
    %1581 = vmatprep.subr.mxu0 0.0
    %1582 = vmatpush1.msra.mxu0 0.0
    %1583 = vmatprep.subr.mxu0 0.0
    %1584 = vmatpush1.msra.mxu0 %v1325
    %1585 = vmatprep.subr.mxu0 0.0
    %1586 = vmatpush2.msra.mxu0 0.0
    %1587 = vmatprep.subr.mxu0 0.0
    %1588 = vmatpush2.msra.mxu0 0.0
    %1589 = vmatprep.subr.mxu0 0.0
    %1590 = vmatpush2.msra.mxu0 0.0
    %1591 = vmatprep.subr.mxu0 0.0
    %1592 = vmatpush2.msra.mxu0 0.0
    %1593 = vmatprep.subr.mxu0 0.0
    %1594 = vmatpush2.msra.mxu0 0.0
    %1595 = vmatprep.subr.mxu0 0.0
    %1596 = vmatpush2.msra.mxu0 0.0
    %1597 = vmatprep.subr.mxu0 0.0
    %1598 = vmatpush2.msra.mxu0 0.0
    %1599 = vmatprep.subr.mxu0 0.0
    %1600 = vmatpush2.msra.mxu0 0.0
    %1601 = vmatprep.subr.mxu0 0.0
    %1602 = vmatpush2.msra.mxu0 0.0
    %1603 = vmatprep.subr.mxu0 0.0
    %1604 = vmatpush2.msra.mxu0 0.0
    %1605 = vmatprep.subr.mxu0 0.0
    %1606 = vmatpush2.msra.mxu0 0.0
    %1607 = vmatprep.subr.mxu0 0.0
    %1608 = vmatpush2.msra.mxu0 0.0
    %1609 = vmatprep.subr.mxu0 0.0
    %1610 = vmatpush2.msra.mxu0 0.0
    %1611 = vmatprep.subr.mxu0 0.0
    %1612 = vmatpush2.msra.mxu0 0.0
    %1613 = vmatprep.subr.mxu0 0.0
    %1614 = vmatpush2.msra.mxu0 0.0
    %1615 = vmatprep.subr.mxu0 0.0
    %1616 = vmatpush2.msra.mxu0 0.0
    %1617 = vmatprep.mubr.f32.mxu0 0.0
    %1618 = vmatmul.mubr.f32.gmra.mxu0 %v1551
    %v1619 = vpop.f32.mrf.mxu0
    %v1620 = vadd.f32 0.0, %v1619
    %v1621 = vpop.f32.mrf.mxu0
    %1622 = vdwg.mxu0
    %v1624 = vsel %vm1330, %v1318, 0
    %1626 = vmatprep.subr.mxu0 0.0
    %1627 = vmatpush1.msra.mxu0 0.0
    %1628 = vmatprep.subr.mxu0 0.0
    %1629 = vmatpush1.msra.mxu0 0.0
    %1630 = vmatprep.subr.mxu0 0.0
    %1631 = vmatpush1.msra.mxu0 0.0
    %1632 = vmatprep.subr.mxu0 0.0
    %1633 = vmatpush1.msra.mxu0 0.0
    %1634 = vmatprep.subr.mxu0 0.0
    %1635 = vmatpush1.msra.mxu0 0.0
    %1636 = vmatprep.subr.mxu0 0.0
    %1637 = vmatpush1.msra.mxu0 0.0
    %1638 = vmatprep.subr.mxu0 0.0
    %1639 = vmatpush1.msra.mxu0 0.0
    %1640 = vmatprep.subr.mxu0 0.0
    %1641 = vmatpush1.msra.mxu0 0.0
    %1642 = vmatprep.subr.mxu0 0.0
    %1643 = vmatpush1.msra.mxu0 0.0
    %1644 = vmatprep.subr.mxu0 0.0
    %1645 = vmatpush1.msra.mxu0 0.0
    %1646 = vmatprep.subr.mxu0 0.0
    %1647 = vmatpush1.msra.mxu0 0.0
    %1648 = vmatprep.subr.mxu0 0.0
    %1649 = vmatpush1.msra.mxu0 0.0
    %1650 = vmatprep.subr.mxu0 0.0
    %1651 = vmatpush1.msra.mxu0 0.0
    %1652 = vmatprep.subr.mxu0 0.0
    %1653 = vmatpush1.msra.mxu0 0.0
    %1654 = vmatprep.subr.mxu0 0.0
    %1655 = vmatpush1.msra.mxu0 0.0
    %1656 = vmatprep.subr.mxu0 0.0
    %1657 = vmatpush1.msra.mxu0 %v1326
    %1658 = vmatprep.subr.mxu0 0.0
    %1659 = vmatpush2.msra.mxu0 0.0
    %1660 = vmatprep.subr.mxu0 0.0
    %1661 = vmatpush2.msra.mxu0 0.0
    %1662 = vmatprep.subr.mxu0 0.0
    %1663 = vmatpush2.msra.mxu0 0.0
    %1664 = vmatprep.subr.mxu0 0.0
    %1665 = vmatpush2.msra.mxu0 0.0
    %1666 = vmatprep.subr.mxu0 0.0
    %1667 = vmatpush2.msra.mxu0 0.0
    %1668 = vmatprep.subr.mxu0 0.0
    %1669 = vmatpush2.msra.mxu0 0.0
    %1670 = vmatprep.subr.mxu0 0.0
    %1671 = vmatpush2.msra.mxu0 0.0
    %1672 = vmatprep.subr.mxu0 0.0
    %1673 = vmatpush2.msra.mxu0 0.0
    %1674 = vmatprep.subr.mxu0 0.0
    %1675 = vmatpush2.msra.mxu0 0.0
    %1676 = vmatprep.subr.mxu0 0.0
    %1677 = vmatpush2.msra.mxu0 0.0
    %1678 = vmatprep.subr.mxu0 0.0
    %1679 = vmatpush2.msra.mxu0 0.0
    %1680 = vmatprep.subr.mxu0 0.0
    %1681 = vmatpush2.msra.mxu0 0.0
    %1682 = vmatprep.subr.mxu0 0.0
    %1683 = vmatpush2.msra.mxu0 0.0
    %1684 = vmatprep.subr.mxu0 0.0
    %1685 = vmatpush2.msra.mxu0 0.0
    %1686 = vmatprep.subr.mxu0 0.0
    %1687 = vmatpush2.msra.mxu0 0.0
    %1688 = vmatprep.subr.mxu0 0.0
    %1689 = vmatpush2.msra.mxu0 0.0
    %1690 = vmatprep.mubr.f32.mxu0 0.0
    %1691 = vmatmul.mubr.f32.gmra.mxu0 %v1624
    %v1692 = vpop.f32.mrf.mxu0
    %v1693 = vadd.f32 0.0, %v1692
    %v1694 = vpop.f32.mrf.mxu0
    %1695 = vdwg.mxu0
    %v1697 = vsel %vm1330, %v1319, 0
    %1699 = vmatprep.subr.mxu0 0.0
    %1700 = vmatpush1.msra.mxu0 0.0
    %1701 = vmatprep.subr.mxu0 0.0
    %1702 = vmatpush1.msra.mxu0 0.0
    %1703 = vmatprep.subr.mxu0 0.0
    %1704 = vmatpush1.msra.mxu0 0.0
    %1705 = vmatprep.subr.mxu0 0.0
    %1706 = vmatpush1.msra.mxu0 0.0
    %1707 = vmatprep.subr.mxu0 0.0
    %1708 = vmatpush1.msra.mxu0 0.0
    %1709 = vmatprep.subr.mxu0 0.0
    %1710 = vmatpush1.msra.mxu0 0.0
    %1711 = vmatprep.subr.mxu0 0.0
    %1712 = vmatpush1.msra.mxu0 0.0
    %1713 = vmatprep.subr.mxu0 0.0
    %1714 = vmatpush1.msra.mxu0 0.0
    %1715 = vmatprep.subr.mxu0 0.0
    %1716 = vmatpush1.msra.mxu0 0.0
    %1717 = vmatprep.subr.mxu0 0.0
    %1718 = vmatpush1.msra.mxu0 0.0
    %1719 = vmatprep.subr.mxu0 0.0
    %1720 = vmatpush1.msra.mxu0 0.0
    %1721 = vmatprep.subr.mxu0 0.0
    %1722 = vmatpush1.msra.mxu0 0.0
    %1723 = vmatprep.subr.mxu0 0.0
    %1724 = vmatpush1.msra.mxu0 0.0
    %1725 = vmatprep.subr.mxu0 0.0
    %1726 = vmatpush1.msra.mxu0 0.0
    %1727 = vmatprep.subr.mxu0 0.0
    %1728 = vmatpush1.msra.mxu0 0.0
    %1729 = vmatprep.subr.mxu0 0.0
    %1730 = vmatpush1.msra.mxu0 %v1327
    %1731 = vmatprep.subr.mxu0 0.0
    %1732 = vmatpush2.msra.mxu0 0.0
    %1733 = vmatprep.subr.mxu0 0.0
    %1734 = vmatpush2.msra.mxu0 0.0
    %1735 = vmatprep.subr.mxu0 0.0
    %1736 = vmatpush2.msra.mxu0 0.0
    %1737 = vmatprep.subr.mxu0 0.0
    %1738 = vmatpush2.msra.mxu0 0.0
    %1739 = vmatprep.subr.mxu0 0.0
    %1740 = vmatpush2.msra.mxu0 0.0
    %1741 = vmatprep.subr.mxu0 0.0
    %1742 = vmatpush2.msra.mxu0 0.0
    %1743 = vmatprep.subr.mxu0 0.0
    %1744 = vmatpush2.msra.mxu0 0.0
    %1745 = vmatprep.subr.mxu0 0.0
    %1746 = vmatpush2.msra.mxu0 0.0
    %1747 = vmatprep.subr.mxu0 0.0
    %1748 = vmatpush2.msra.mxu0 0.0
    %1749 = vmatprep.subr.mxu0 0.0
    %1750 = vmatpush2.msra.mxu0 0.0
    %1751 = vmatprep.subr.mxu0 0.0
    %1752 = vmatpush2.msra.mxu0 0.0
    %1753 = vmatprep.subr.mxu0 0.0
    %1754 = vmatpush2.msra.mxu0 0.0
    %1755 = vmatprep.subr.mxu0 0.0
    %1756 = vmatpush2.msra.mxu0 0.0
    %1757 = vmatprep.subr.mxu0 0.0
    %1758 = vmatpush2.msra.mxu0 0.0
    %1759 = vmatprep.subr.mxu0 0.0
    %1760 = vmatpush2.msra.mxu0 0.0
    %1761 = vmatprep.subr.mxu0 0.0
    %1762 = vmatpush2.msra.mxu0 0.0
    %1763 = vmatprep.mubr.f32.mxu0 0.0
    %1764 = vmatmul.mubr.f32.gmra.mxu0 %v1697
    %v1765 = vpop.f32.mrf.mxu0
    %v1766 = vadd.f32 0.0, %v1765
    %v1767 = vpop.f32.mrf.mxu0
    %1768 = vdwg.mxu0
    %v1770 = vsel %vm1330, %v1320, 0
    %1772 = vmatprep.subr.mxu0 0.0
    %1773 = vmatpush1.msra.mxu0 0.0
    %1774 = vmatprep.subr.mxu0 0.0
    %1775 = vmatpush1.msra.mxu0 0.0
    %1776 = vmatprep.subr.mxu0 0.0
    %1777 = vmatpush1.msra.mxu0 0.0
    %1778 = vmatprep.subr.mxu0 0.0
    %1779 = vmatpush1.msra.mxu0 0.0
    %1780 = vmatprep.subr.mxu0 0.0
    %1781 = vmatpush1.msra.mxu0 0.0
    %1782 = vmatprep.subr.mxu0 0.0
    %1783 = vmatpush1.msra.mxu0 0.0
    %1784 = vmatprep.subr.mxu0 0.0
    %1785 = vmatpush1.msra.mxu0 0.0
    %1786 = vmatprep.subr.mxu0 0.0
    %1787 = vmatpush1.msra.mxu0 0.0
    %1788 = vmatprep.subr.mxu0 0.0
    %1789 = vmatpush1.msra.mxu0 0.0
    %1790 = vmatprep.subr.mxu0 0.0
    %1791 = vmatpush1.msra.mxu0 0.0
    %1792 = vmatprep.subr.mxu0 0.0
    %1793 = vmatpush1.msra.mxu0 0.0
    %1794 = vmatprep.subr.mxu0 0.0
    %1795 = vmatpush1.msra.mxu0 0.0
    %1796 = vmatprep.subr.mxu0 0.0
    %1797 = vmatpush1.msra.mxu0 0.0
    %1798 = vmatprep.subr.mxu0 0.0
    %1799 = vmatpush1.msra.mxu0 0.0
    %1800 = vmatprep.subr.mxu0 0.0
    %1801 = vmatpush1.msra.mxu0 0.0
    %1802 = vmatprep.subr.mxu0 0.0
    %1803 = vmatpush1.msra.mxu0 %v1328
    %1804 = vmatprep.subr.mxu0 0.0
    %1805 = vmatpush2.msra.mxu0 0.0
    %1806 = vmatprep.subr.mxu0 0.0
    %1807 = vmatpush2.msra.mxu0 0.0
    %1808 = vmatprep.subr.mxu0 0.0
    %1809 = vmatpush2.msra.mxu0 0.0
    %1810 = vmatprep.subr.mxu0 0.0
    %1811 = vmatpush2.msra.mxu0 0.0
    %1812 = vmatprep.subr.mxu0 0.0
    %1813 = vmatpush2.msra.mxu0 0.0
    %1814 = vmatprep.subr.mxu0 0.0
    %1815 = vmatpush2.msra.mxu0 0.0
    %1816 = vmatprep.subr.mxu0 0.0
    %1817 = vmatpush2.msra.mxu0 0.0
    %1818 = vmatprep.subr.mxu0 0.0
    %1819 = vmatpush2.msra.mxu0 0.0
    %1820 = vmatprep.subr.mxu0 0.0
    %1821 = vmatpush2.msra.mxu0 0.0
    %1822 = vmatprep.subr.mxu0 0.0
    %1823 = vmatpush2.msra.mxu0 0.0
    %1824 = vmatprep.subr.mxu0 0.0
    %1825 = vmatpush2.msra.mxu0 0.0
    %1826 = vmatprep.subr.mxu0 0.0
    %1827 = vmatpush2.msra.mxu0 0.0
    %1828 = vmatprep.subr.mxu0 0.0
    %1829 = vmatpush2.msra.mxu0 0.0
    %1830 = vmatprep.subr.mxu0 0.0
    %1831 = vmatpush2.msra.mxu0 0.0
    %1832 = vmatprep.subr.mxu0 0.0
    %1833 = vmatpush2.msra.mxu0 0.0
    %1834 = vmatprep.subr.mxu0 0.0
    %1835 = vmatpush2.msra.mxu0 0.0
    %1836 = vmatprep.mubr.f32.mxu0 0.0
    %1837 = vmatmul.mubr.f32.gmra.mxu0 %v1770
    %v1838 = vpop.f32.mrf.mxu0
    %v1839 = vadd.f32 0.0, %v1838
    %v1840 = vpop.f32.mrf.mxu0
    %1841 = vdwg.mxu0
    %v1843 = vsel %vm1330, %v1321, 0
    %1845 = vmatprep.subr.mxu0 0.0
    %1846 = vmatpush1.msra.mxu0 0.0
    %1847 = vmatprep.subr.mxu0 0.0
    %1848 = vmatpush1.msra.mxu0 0.0
    %1849 = vmatprep.subr.mxu0 0.0
    %1850 = vmatpush1.msra.mxu0 0.0
    %1851 = vmatprep.subr.mxu0 0.0
    %1852 = vmatpush1.msra.mxu0 0.0
    %1853 = vmatprep.subr.mxu0 0.0
    %1854 = vmatpush1.msra.mxu0 0.0
    %1855 = vmatprep.subr.mxu0 0.0
    %1856 = vmatpush1.msra.mxu0 0.0
    %1857 = vmatprep.subr.mxu0 0.0
    %1858 = vmatpush1.msra.mxu0 0.0
    %1859 = vmatprep.subr.mxu0 0.0
    %1860 = vmatpush1.msra.mxu0 0.0
    %1861 = vmatprep.subr.mxu0 0.0
    %1862 = vmatpush1.msra.mxu0 0.0
    %1863 = vmatprep.subr.mxu0 0.0
    %1864 = vmatpush1.msra.mxu0 0.0
    %1865 = vmatprep.subr.mxu0 0.0
    %1866 = vmatpush1.msra.mxu0 0.0
    %1867 = vmatprep.subr.mxu0 0.0
    %1868 = vmatpush1.msra.mxu0 0.0
    %1869 = vmatprep.subr.mxu0 0.0
    %1870 = vmatpush1.msra.mxu0 0.0
    %1871 = vmatprep.subr.mxu0 0.0
    %1872 = vmatpush1.msra.mxu0 0.0
    %1873 = vmatprep.subr.mxu0 0.0
    %1874 = vmatpush1.msra.mxu0 0.0
    %1875 = vmatprep.subr.mxu0 0.0
    %1876 = vmatpush1.msra.mxu0 %v1329
    %1877 = vmatprep.subr.mxu0 0.0
    %1878 = vmatpush2.msra.mxu0 0.0
    %1879 = vmatprep.subr.mxu0 0.0
    %1880 = vmatpush2.msra.mxu0 0.0
    %1881 = vmatprep.subr.mxu0 0.0
    %1882 = vmatpush2.msra.mxu0 0.0
    %1883 = vmatprep.subr.mxu0 0.0
    %1884 = vmatpush2.msra.mxu0 0.0
    %1885 = vmatprep.subr.mxu0 0.0
    %1886 = vmatpush2.msra.mxu0 0.0
    %1887 = vmatprep.subr.mxu0 0.0
    %1888 = vmatpush2.msra.mxu0 0.0
    %1889 = vmatprep.subr.mxu0 0.0
    %1890 = vmatpush2.msra.mxu0 0.0
    %1891 = vmatprep.subr.mxu0 0.0
    %1892 = vmatpush2.msra.mxu0 0.0
    %1893 = vmatprep.subr.mxu0 0.0
    %1894 = vmatpush2.msra.mxu0 0.0
    %1895 = vmatprep.subr.mxu0 0.0
    %1896 = vmatpush2.msra.mxu0 0.0
    %1897 = vmatprep.subr.mxu0 0.0
    %1898 = vmatpush2.msra.mxu0 0.0
    %1899 = vmatprep.subr.mxu0 0.0
    %1900 = vmatpush2.msra.mxu0 0.0
    %1901 = vmatprep.subr.mxu0 0.0
    %1902 = vmatpush2.msra.mxu0 0.0
    %1903 = vmatprep.subr.mxu0 0.0
    %1904 = vmatpush2.msra.mxu0 0.0
    %1905 = vmatprep.subr.mxu0 0.0
    %1906 = vmatpush2.msra.mxu0 0.0
    %1907 = vmatprep.subr.mxu0 0.0
    %1908 = vmatpush2.msra.mxu0 0.0
    %1909 = vmatprep.mubr.f32.mxu0 0.0
    %1910 = vmatmul.mubr.f32.gmra.mxu0 %v1843
    %v1911 = vpop.f32.mrf.mxu0
    %v1912 = vadd.f32 0.0, %v1911
    %v1913 = vpop.f32.mrf.mxu0
    %1914 = vdwg.mxu0
    %v1915 = vld [vmem:[%s8] sm:$0xff]
    %v1916 = vld [vmem:[%s8 + $0x8] sm:$0xff]
    %v1917 = vld [vmem:[%s8 + $0x10] sm:$0xff]
    %v1918 = vld [vmem:[%s8 + $0x18] sm:$0xff]
    %v1919 = vld [vmem:[%s8 + $0x20] sm:$0xff]
    %v1920 = vld [vmem:[%s8 + $0x28] sm:$0xff]
    %v1921 = vld [vmem:[%s8 + $0x30] sm:$0xff]
    %v1922 = vld [vmem:[%s8 + $0x38] sm:$0xff]
    %v1923 = vld [vmem:[%s8 + $0x40] sm:$0xff]
    %v1924 = vld [vmem:[%s8 + $0x48] sm:$0xff]
    %v1925 = vld [vmem:[%s8 + $0x50] sm:$0xff]
    %v1926 = vld [vmem:[%s8 + $0x58] sm:$0xff]
    %v1927 = vld [vmem:[%s8 + $0x60] sm:$0xff]
    %v1928 = vld [vmem:[%s8 + $0x68] sm:$0xff]
    %v1929 = vld [vmem:[%s8 + $0x70] sm:$0xff]
    %v1930 = vld [vmem:[%s8 + $0x78] sm:$0xff]
    %v1931 = vld [vmem:[%s9] sm:$0xff]
    %v1932 = vld [vmem:[%s9 + $0x8] sm:$0xff]
    %v1933 = vld [vmem:[%s9 + $0x10] sm:$0xff]
    %v1934 = vld [vmem:[%s9 + $0x18] sm:$0xff]
    %v1935 = vld [vmem:[%s9 + $0x20] sm:$0xff]
    %v1936 = vld [vmem:[%s9 + $0x28] sm:$0xff]
    %v1937 = vld [vmem:[%s9 + $0x30] sm:$0xff]
    %v1938 = vld [vmem:[%s9 + $0x38] sm:$0xff]
    %v1939 = vld [vmem:[%s9 + $0x40] sm:$0xff]
    %v1940 = vld [vmem:[%s9 + $0x48] sm:$0xff]
    %v1941 = vld [vmem:[%s9 + $0x50] sm:$0xff]
    %v1942 = vld [vmem:[%s9 + $0x58] sm:$0xff]
    %v1943 = vld [vmem:[%s9 + $0x60] sm:$0xff]
    %v1944 = vld [vmem:[%s9 + $0x68] sm:$0xff]
    %v1945 = vld [vmem:[%s9 + $0x70] sm:$0xff]
    %v1946 = vld [vmem:[%s9 + $0x78] sm:$0xff]
    %v1955 = vrot.slane %v1474, 7
    %vm1956 = vcmask 1041409
    %v1957 = vsel %vm1956, %v1955, %v1401
    %v1958 = vrot.slane %v1547, 6
    %vm1959 = vcmask 1042434
    %v1960 = vsel %vm1959, %v1958, %v1957
    %v1961 = vrot.slane %v1620, 5
    %vm1962 = vcmask 1043459
    %v1963 = vsel %vm1962, %v1961, %v1960
    %v1964 = vrot.slane %v1693, 4
    %vm1965 = vcmask 1044484
    %v1966 = vsel %vm1965, %v1964, %v1963
    %v1967 = vrot.slane %v1766, 3
    %vm1968 = vcmask 1045509
    %v1969 = vsel %vm1968, %v1967, %v1966
    %v1970 = vrot.slane %v1839, 2
    %vm1971 = vcmask 1046534
    %v1972 = vsel %vm1971, %v1970, %v1969
    %v1973 = vrot.slane %v1912, 1
    %vm1974 = vcmask 1047559
    %v1975 = vsel %vm1974, %v1973, %v1972
    %1977 = vmatprep.subr.mxu0 0.0
    %1978 = vmatpush1.msra.mxu0 %v1946
    %1979 = vmatprep.subr.mxu0 0.0
    %1980 = vmatpush1.msra.mxu0 %v1945
    %1981 = vmatprep.subr.mxu0 0.0
    %1982 = vmatpush1.msra.mxu0 %v1944
    %1983 = vmatprep.subr.mxu0 0.0
    %1984 = vmatpush1.msra.mxu0 %v1943
    %1985 = vmatprep.subr.mxu0 0.0
    %1986 = vmatpush1.msra.mxu0 %v1942
    %1987 = vmatprep.subr.mxu0 0.0
    %1988 = vmatpush1.msra.mxu0 %v1941
    %1989 = vmatprep.subr.mxu0 0.0
    %1990 = vmatpush1.msra.mxu0 %v1940
    %1991 = vmatprep.subr.mxu0 0.0
    %1992 = vmatpush1.msra.mxu0 %v1939
    %1993 = vmatprep.subr.mxu0 0.0
    %1994 = vmatpush1.msra.mxu0 %v1938
    %1995 = vmatprep.subr.mxu0 0.0
    %1996 = vmatpush1.msra.mxu0 %v1937
    %1997 = vmatprep.subr.mxu0 0.0
    %1998 = vmatpush1.msra.mxu0 %v1936
    %1999 = vmatprep.subr.mxu0 0.0
    %2000 = vmatpush1.msra.mxu0 %v1935
    %2001 = vmatprep.subr.mxu0 0.0
    %2002 = vmatpush1.msra.mxu0 %v1934
    %2003 = vmatprep.subr.mxu0 0.0
    %2004 = vmatpush1.msra.mxu0 %v1933
    %2005 = vmatprep.subr.mxu0 0.0
    %2006 = vmatpush1.msra.mxu0 %v1932
    %2007 = vmatprep.subr.mxu0 0.0
    %2008 = vmatpush1.msra.mxu0 %v1931
    %2009 = vmatprep.subr.mxu0 0.0
    %2010 = vmatpush2.msra.mxu0 0.0
    %2011 = vmatprep.subr.mxu0 0.0
    %2012 = vmatpush2.msra.mxu0 0.0
    %2013 = vmatprep.subr.mxu0 0.0
    %2014 = vmatpush2.msra.mxu0 0.0
    %2015 = vmatprep.subr.mxu0 0.0
    %2016 = vmatpush2.msra.mxu0 0.0
    %2017 = vmatprep.subr.mxu0 0.0
    %2018 = vmatpush2.msra.mxu0 0.0
    %2019 = vmatprep.subr.mxu0 0.0
    %2020 = vmatpush2.msra.mxu0 0.0
    %2021 = vmatprep.subr.mxu0 0.0
    %2022 = vmatpush2.msra.mxu0 0.0
    %2023 = vmatprep.subr.mxu0 0.0
    %2024 = vmatpush2.msra.mxu0 0.0
    %2025 = vmatprep.subr.mxu0 0.0
    %2026 = vmatpush2.msra.mxu0 0.0
    %2027 = vmatprep.subr.mxu0 0.0
    %2028 = vmatpush2.msra.mxu0 0.0
    %2029 = vmatprep.subr.mxu0 0.0
    %2030 = vmatpush2.msra.mxu0 0.0
    %2031 = vmatprep.subr.mxu0 0.0
    %2032 = vmatpush2.msra.mxu0 0.0
    %2033 = vmatprep.subr.mxu0 0.0
    %2034 = vmatpush2.msra.mxu0 0.0
    %2035 = vmatprep.subr.mxu0 0.0
    %2036 = vmatpush2.msra.mxu0 0.0
    %2037 = vmatprep.subr.mxu0 0.0
    %2038 = vmatpush2.msra.mxu0 0.0
    %2039 = vmatprep.subr.mxu0 0.0
    %2040 = vmatpush2.msra.mxu0 0.0
    %2041 = vmatprep.mubr.f32.mxu0 0.0
    %2042 = vmatmul.mubr.f32.gmra.mxu0 %v1975
    %v2043 = vpop.f32.mrf.mxu0
    %v2044 = vadd.f32 0.0, %v2043
    %v2045 = vpop.f32.mrf.mxu0
    %2046 = vdwg.mxu0
    %2047 = vmatprep.subr.mxu0 0.0
    %2048 = vmatpush1.msra.mxu0 %v1930
    %2049 = vmatprep.subr.mxu0 0.0
    %2050 = vmatpush1.msra.mxu0 %v1929
    %2051 = vmatprep.subr.mxu0 0.0
    %2052 = vmatpush1.msra.mxu0 %v1928
    %2053 = vmatprep.subr.mxu0 0.0
    %2054 = vmatpush1.msra.mxu0 %v1927
    %2055 = vmatprep.subr.mxu0 0.0
    %2056 = vmatpush1.msra.mxu0 %v1926
    %2057 = vmatprep.subr.mxu0 0.0
    %2058 = vmatpush1.msra.mxu0 %v1925
    %2059 = vmatprep.subr.mxu0 0.0
    %2060 = vmatpush1.msra.mxu0 %v1924
    %2061 = vmatprep.subr.mxu0 0.0
    %2062 = vmatpush1.msra.mxu0 %v1923
    %2063 = vmatprep.subr.mxu0 0.0
    %2064 = vmatpush1.msra.mxu0 %v1922
    %2065 = vmatprep.subr.mxu0 0.0
    %2066 = vmatpush1.msra.mxu0 %v1921
    %2067 = vmatprep.subr.mxu0 0.0
    %2068 = vmatpush1.msra.mxu0 %v1920
    %2069 = vmatprep.subr.mxu0 0.0
    %2070 = vmatpush1.msra.mxu0 %v1919
    %2071 = vmatprep.subr.mxu0 0.0
    %2072 = vmatpush1.msra.mxu0 %v1918
    %2073 = vmatprep.subr.mxu0 0.0
    %2074 = vmatpush1.msra.mxu0 %v1917
    %2075 = vmatprep.subr.mxu0 0.0
    %2076 = vmatpush1.msra.mxu0 %v1916
    %2077 = vmatprep.subr.mxu0 0.0
    %2078 = vmatpush1.msra.mxu0 %v1915
    %2079 = vmatprep.subr.mxu0 0.0
    %2080 = vmatpush2.msra.mxu0 0.0
    %2081 = vmatprep.subr.mxu0 0.0
    %2082 = vmatpush2.msra.mxu0 0.0
    %2083 = vmatprep.subr.mxu0 0.0
    %2084 = vmatpush2.msra.mxu0 0.0
    %2085 = vmatprep.subr.mxu0 0.0
    %2086 = vmatpush2.msra.mxu0 0.0
    %2087 = vmatprep.subr.mxu0 0.0
    %2088 = vmatpush2.msra.mxu0 0.0
    %2089 = vmatprep.subr.mxu0 0.0
    %2090 = vmatpush2.msra.mxu0 0.0
    %2091 = vmatprep.subr.mxu0 0.0
    %2092 = vmatpush2.msra.mxu0 0.0
    %2093 = vmatprep.subr.mxu0 0.0
    %2094 = vmatpush2.msra.mxu0 0.0
    %2095 = vmatprep.subr.mxu0 0.0
    %2096 = vmatpush2.msra.mxu0 0.0
    %2097 = vmatprep.subr.mxu0 0.0
    %2098 = vmatpush2.msra.mxu0 0.0
    %2099 = vmatprep.subr.mxu0 0.0
    %2100 = vmatpush2.msra.mxu0 0.0
    %2101 = vmatprep.subr.mxu0 0.0
    %2102 = vmatpush2.msra.mxu0 0.0
    %2103 = vmatprep.subr.mxu0 0.0
    %2104 = vmatpush2.msra.mxu0 0.0
    %2105 = vmatprep.subr.mxu0 0.0
    %2106 = vmatpush2.msra.mxu0 0.0
    %2107 = vmatprep.subr.mxu0 0.0
    %2108 = vmatpush2.msra.mxu0 0.0
    %2109 = vmatprep.subr.mxu0 0.0
    %2110 = vmatpush2.msra.mxu0 0.0
    %2111 = vmatprep.mubr.f32.mxu0 0.0
    %2112 = vmatmul.mubr.f32.gmra.mxu0 %v485
    %v2113 = vpop.f32.mrf.mxu0
    %v2114 = vadd.f32 %v2044, %v2113
    %v2115 = vpop.f32.mrf.mxu0
    %2116 = vdwg.mxu0
    %v2117 = vld [vmem:[%s10] sm:$0x1]
    %v2119 = vlaneseq
    %v2120 = vshrl.u32 %v2119, 7
    %v2121 = vsub.s32 0, %v2120
    %v2122 = vrot.slane %v2117, %v2121
    %v2124 = vadd.f32 %v2114, %v2122
    %v2125 = vtanh.pop %v2124
    %2126 = vst [vmem:[#allocation2] sm:$0xff] %v2125
  $region57: #{luong_decoder_forward.1} parent=0 // pred_fallthru
    _
  %v2127 = vld [vmem:[#allocation2] sm:$0xff]
  %v2128 = vpack.c.bf16 %v2127, %v2127
  %v2129 = vld [vmem:[%s11] sm:$0xf]
  %v2130 = vld [vmem:[%s11 + $0x4] sm:$0xf]
  %v2131 = vld [vmem:[%s11 + $0x8] sm:$0xf]
  %v2132 = vld [vmem:[%s11 + $0xc] sm:$0xf]
  %v2133 = vld [vmem:[%s11 + $0x10] sm:$0xf]
  %v2134 = vld [vmem:[%s11 + $0x14] sm:$0xf]
  %v2135 = vld [vmem:[%s11 + $0x18] sm:$0xf]
  %v2136 = vld [vmem:[%s11 + $0x1c] sm:$0xf]
  %v2137 = vld [vmem:[%s11 + $0x20] sm:$0xf]
  %v2138 = vld [vmem:[%s11 + $0x24] sm:$0xf]
  %v2139 = vld [vmem:[%s11 + $0x28] sm:$0xf]
  %v2140 = vld [vmem:[%s11 + $0x2c] sm:$0xf]
  %v2141 = vld [vmem:[%s11 + $0x30] sm:$0xf]
  %v2142 = vld [vmem:[%s11 + $0x34] sm:$0xf]
  %v2143 = vld [vmem:[%s11 + $0x38] sm:$0xf]
  %v2144 = vld [vmem:[%s11 + $0x3c] sm:$0xf]
  %v2145 = vld [vmem:[%s12] sm:$0x1]
  %v2147 = vlaneseq
  %v2148 = vshrl.u32 %v2147, 7
  %v2149 = vsub.s32 0, %v2148
  %v2150 = vrot.slane %v2145, %v2149
  %v2168 = vunpack.c.l.b16 %v2129
  %v2169 = vunpack.c.l.b16 %v2130
  %v2170 = vunpack.c.l.b16 %v2131
  %v2171 = vunpack.c.l.b16 %v2132
  %v2172 = vunpack.c.l.b16 %v2133
  %v2173 = vunpack.c.l.b16 %v2134
  %v2174 = vunpack.c.l.b16 %v2135
  %v2175 = vunpack.c.l.b16 %v2136
  %v2176 = vunpack.c.l.b16 %v2137
  %v2177 = vunpack.c.l.b16 %v2138
  %v2178 = vunpack.c.l.b16 %v2139
  %v2179 = vunpack.c.l.b16 %v2140
  %v2180 = vunpack.c.l.b16 %v2141
  %v2181 = vunpack.c.l.b16 %v2142
  %v2182 = vunpack.c.l.b16 %v2143
  %v2183 = vunpack.c.l.b16 %v2144
  %v2184 = vpack.c.b16 %v2169, %v2168
  %v2185 = vpack.c.b16 %v2171, %v2170
  %v2186 = vpack.c.b16 %v2173, %v2172
  %v2187 = vpack.c.b16 %v2175, %v2174
  %v2188 = vpack.c.b16 %v2177, %v2176
  %v2189 = vpack.c.b16 %v2179, %v2178
  %v2190 = vpack.c.b16 %v2181, %v2180
  %v2191 = vpack.c.b16 %v2183, %v2182
  %2200 = vmatprep.subr.bf16.mxu0 0
  %2201 = vmatpush1.bf16.msra.mxu0 %v2191
  %2202 = vmatprep.subr.bf16.mxu0 0
  %2203 = vmatpush1.bf16.msra.mxu0 %v2190
  %2204 = vmatprep.subr.bf16.mxu0 0
  %2205 = vmatpush1.bf16.msra.mxu0 %v2189
  %2206 = vmatprep.subr.bf16.mxu0 0
  %2207 = vmatpush1.bf16.msra.mxu0 %v2188
  %2208 = vmatprep.subr.bf16.mxu0 0
  %2209 = vmatpush1.bf16.msra.mxu0 %v2187
  %2210 = vmatprep.subr.bf16.mxu0 0
  %2211 = vmatpush1.bf16.msra.mxu0 %v2186
  %2212 = vmatprep.subr.bf16.mxu0 0
  %2213 = vmatpush1.bf16.msra.mxu0 %v2185
  %2214 = vmatprep.subr.bf16.mxu0 0
  %2215 = vmatpush1.bf16.msra.mxu0 %v2184
  %2216 = vmatprep.subr.bf16.mxu0 0
  %2217 = vmatpush2.bf16.msra.mxu0 0
  %2218 = vmatprep.subr.bf16.mxu0 0
  %2219 = vmatpush2.bf16.msra.mxu0 0
  %2220 = vmatprep.subr.bf16.mxu0 0
  %2221 = vmatpush2.bf16.msra.mxu0 0
  %2222 = vmatprep.subr.bf16.mxu0 0
  %2223 = vmatpush2.bf16.msra.mxu0 0
  %2224 = vmatprep.subr.bf16.mxu0 0
  %2225 = vmatpush2.bf16.msra.mxu0 0
  %2226 = vmatprep.subr.bf16.mxu0 0
  %2227 = vmatpush2.bf16.msra.mxu0 0
  %2228 = vmatprep.subr.bf16.mxu0 0
  %2229 = vmatpush2.bf16.msra.mxu0 0
  %2230 = vmatprep.subr.bf16.mxu0 0
  %2231 = vmatpush2.bf16.msra.mxu0 0
  %2232 = vmatprep.mubr.bf16.mxu0 0
  %2233 = vmatmul.mubr.bf16.gmra.mxu0 %v2128
  %v2234 = vpop.f32.mrf.mxu0
  %v2235 = vadd.f32 %v2150, %v2234
  %v2236 = vpop.f32.mrf.mxu0
  %v2237 = vpop.f32.mrf.mxu0
  %v2238 = vpop.f32.mrf.mxu0
  %2239 = vdwg.mxu0
  %2240 = vst [vmem:[%s13] sm:$0xff] %v2235
  // Predicated region
  $region58: #{luong_decoder_forward.1} parent=0 // pred_check
    _
  $region59: #{luong_decoder_forward.1} parent=0 // pred_check_branch
    %2242 = sbr.rel (0) target = $region61
  $region60: #{luong_decoder_forward.1} parent=0 // pred_region
    _
  $region61: #{luong_decoder_forward.1} parent=0 // pred_fallthru
    _
  // Predicated region
  $region62: #{luong_decoder_forward.1} parent=0 // pred_check
    _
  $region63: #{luong_decoder_forward.1} parent=0 // pred_check_branch
    %2244 = sbr.rel (0) target = $region65
  $region64: #{luong_decoder_forward.1} parent=0 // pred_region
    _
  $region65: #{luong_decoder_forward.1} parent=0 // pred_fallthru
    _
  // Predicated region
  $region66: #{luong_decoder_forward.1} parent=0 // pred_check
    _
  $region67: #{luong_decoder_forward.1} parent=0 // pred_check_branch
    %2246 = sbr.rel (0) target = $region69
  $region68: #{luong_decoder_forward.1} parent=0 // pred_region
    _
  $region69: #{luong_decoder_forward.1} parent=0 // pred_fallthru
    _
  // Predicated region
  $region70: #{luong_decoder_forward.1} parent=0 // pred_check
    _
  $region71: #{luong_decoder_forward.1} parent=0 // pred_check_branch
    %2248 = sbr.rel (0) target = $region73
  $region72: #{luong_decoder_forward.1} parent=0 // pred_region
    _
  $region73: #{luong_decoder_forward.1} parent=0 // pred_fallthru
    _

</llo_original>
